<compile_context>
chip_gen: v7x
topology: tpu7x:2x2x1
jax: 0.10.0
libtpu: 0.0.40
codegen_flags: <defaults>
</compile_context>

<pallas_src>
import jax
import jax.numpy as jnp
from jax.experimental import pallas as pl
from jax.experimental.pallas import tpu as pltpu

NUM_CLASSES = 10
HIDDEN = 768
N_PAD = 128          # lane-dense padded class dimension
KC = 128             # K-chunk size (feature columns generated per MXU push)
N_KC = HIDDEN // KC  # 6 chunks
TM_MAX = 1024        # max rows per grid step
TWO_PI = 6.283185307179586


# ----------------------------------------------------------------------------
# Portable in-kernel PRNG: counter-based lowbias32 hash + Box-Muller.
# int32 wrap-around arithmetic gives bit-identical results to uint32 math and
# avoids unsigned<->float conversions (only non-negative 23-bit ints hit the
# int->float convert, which is exact and supported everywhere).
# ----------------------------------------------------------------------------
def _s32(x):
    x &= 0xFFFFFFFF
    return x - (1 << 32) if x >= (1 << 31) else x


_GOLDEN = _s32(0x9E3779B9)
_MIX1 = _s32(0x7FEB352D)
_MIX2 = _s32(0x846CA68B)
_SEEDM = _s32(0x85EBCA6B)
_SALT1 = _s32(0x68E31DA4)
_SALT2 = _s32(0xB5297A4D)


def _lsr(x, k):
    # logical shift right on int32: arithmetic shift, then mask off sign-extension
    return (x >> k) & ((1 << (32 - k)) - 1)


def _hash32(x):
    # lowbias32 integer finalizer (good avalanche), all int32 VPU ops.
    x = x ^ _lsr(x, 16)
    x = x * _MIX1
    x = x ^ _lsr(x, 15)
    x = x * _MIX2
    x = x ^ _lsr(x, 16)
    return x


def _u01(bits):
    # low 23 bits -> f32 uniform strictly inside (0, 1) (safe for log()).
    m = bits & 0x007FFFFF
    return m.astype(jnp.float32) * jnp.float32(2.0 ** -23) + jnp.float32(2.0 ** -24)


def _normal_chunk(seed_mix, row_base, col_base, tm):
    """(tm, KC) standard-normal features for global rows/cols; tiling-invariant."""
    rows = jax.lax.broadcasted_iota(jnp.int32, (tm, KC), 0) + row_base
    cols = jax.lax.broadcasted_iota(jnp.int32, (tm, KC), 1) + col_base
    idx = rows * HIDDEN + cols                    # unique per element (wraps OK)
    base = idx * _GOLDEN + seed_mix
    u1 = _u01(_hash32(base ^ _SALT1))
    u2 = _u01(_hash32(base ^ _SALT2))
    r = jnp.sqrt(jnp.float32(-2.0) * jnp.log(u1))
    return r * jnp.cos(jnp.float32(TWO_PI) * u2)  # Box-Muller -> N(0, 1)


# ----------------------------------------------------------------------------
# Kernel
# ----------------------------------------------------------------------------
def _make_kernel(seed, tm, emit_features):
    # Mix the (compile-time) seed once on the host.
    seed_mix = _s32((int(seed) & 0xFFFFFFFF) * 0x85EBCA6B)

    def body(w_ref, b_ref, o_ref, f_ref):
        # w_ref: (HIDDEN, N_PAD) bf16, zero-padded past column NUM_CLASSES
        # b_ref: (1, N_PAD)      f32, zero-padded
        # o_ref: (tm, N_PAD)     f32 logits tile (lane-dense, unmasked stores)
        # f_ref: optional (tm, HIDDEN) f32 feature tile (debug/verification only)
        row_base = pl.program_id(0) * tm
        acc = jnp.zeros((tm, N_PAD), jnp.float32)
        # K-chunked generate->matmul fusion: EUP/VPU normal generation overlaps
        # with MXU vmatmul; only a (tm, KC) chunk is ever live.
        for kc in range(N_KC):
            c0 = kc * KC
            feats = _normal_chunk(seed_mix, row_base, c0, tm)       # f32 (tm, KC)
            acc = acc + jnp.dot(
                feats.astype(jnp.bfloat16),
                w_ref[c0:c0 + KC, :],
                preferred_element_type=jnp.float32,
            )
            if f_ref is not None:
                f_ref[:, c0:c0 + KC] = feats
        o_ref[...] = acc + b_ref[...]

    if emit_features:
        def kernel(w_ref, b_ref, o_ref, f_ref):
            body(w_ref, b_ref, o_ref, f_ref)
    else:
        def kernel(w_ref, b_ref, o_ref):
            body(w_ref, b_ref, o_ref, None)
    return kernel


# ----------------------------------------------------------------------------
# Host-side helpers / wrapper
# ----------------------------------------------------------------------------
def _round_up(x, m):
    return (x + m - 1) // m * m


def _choose_tile(batch_size):
    """Adaptive M tile: minimize padded-row waste, keep sublane alignment."""
    m8 = _round_up(max(batch_size, 1), 8)
    if m8 <= TM_MAX:
        return m8, m8
    best = None
    for tm in (128, 256, 512, 1024):
        m_pad = _round_up(batch_size, tm)
        waste = m_pad - batch_size
        if best is None or waste < best[0] or (waste == best[0] and tm > best[2]):
            best = (waste, m_pad, tm)
    return best[2], best[1]


def prepare_params(weight, bias):
    """One-time param prep: transpose, bf16 weight, zero-pad lanes to 128.

    weight: (NUM_CLASSES, HIDDEN)  -- PyTorch nn.Linear convention
    bias:   (NUM_CLASSES,)
    """
    w_pad = jnp.zeros((HIDDEN, N_PAD), jnp.bfloat16)
    w_pad = w_pad.at[:, :NUM_CLASSES].set(weight.T.astype(jnp.bfloat16))
    b_pad = jnp.zeros((1, N_PAD), jnp.float32)
    b_pad = b_pad.at[:, :NUM_CLASSES].set(bias.astype(jnp.float32))
    return w_pad, b_pad


def mock_forward_pallas(seed, w_pad, b_pad, batch_size, *, emit_features=False):
    tm, m_pad = _choose_tile(batch_size)
    grid = (m_pad // tm,)
    kernel = _make_kernel(seed, tm, emit_features)

    logits_shape = jax.ShapeDtypeStruct((m_pad, N_PAD), jnp.float32)
    logits_spec = pl.BlockSpec((tm, N_PAD), lambda i: (i, 0))
    in_specs = [
        pl.BlockSpec((HIDDEN, N_PAD), lambda i: (0, 0)),  # weight (resident)
        pl.BlockSpec((1, N_PAD), lambda i: (0, 0)),       # bias   (resident)
    ]
    if emit_features:
        out_shape = (logits_shape, jax.ShapeDtypeStruct((m_pad, HIDDEN), jnp.float32))
        out_specs = (logits_spec, pl.BlockSpec((tm, HIDDEN), lambda i: (i, 0)))
    else:
        out_shape = logits_shape
        out_specs = logits_spec

    fn = pl.pallas_call(
        kernel,
        out_shape=out_shape,
        grid=grid,
        in_specs=in_specs,
        out_specs=out_specs,
        compiler_params=pltpu.CompilerParams(
            dimension_semantics=("parallel",),   # M tiles are independent
            vmem_limit_bytes=16 << 20,           # far below physical VMEM on all gens
        ),
    )
    out = fn(w_pad, b_pad)
    # NOTE: for large batches, prefer consuming the padded (m_pad, 128) buffer
    # inside a jit region so this slice fuses instead of re-reading the output.
    if emit_features:
        logits_pad, feats_pad = out
        return logits_pad[:batch_size, :NUM_CLASSES], feats_pad[:batch_size]
    return out[:batch_size, :NUM_CLASSES]


def mock_model_forward(pixel_values, w_pad, b_pad, seed):
    """Mirror of MockModel.forward: only the batch dim of pixel_values is consumed."""
    batch_size = pixel_values.shape[0]
    return mock_forward_pallas(seed, w_pad, b_pad, batch_size)


if __name__ == "__main__":
    key = jax.random.PRNGKey(0)
    k_pix, k_w, k_b = jax.random.split(key, 3)

    # Small, shape-consistent example input (only the batch dim matters to forward).
    pixel_values = jax.random.normal(k_pix, (2, 4, 16, 16), dtype=jnp.float32)

    # Deterministic parameter init matching nn.Linear(768, 10) shapes.
    bound = 1.0 / (HIDDEN ** 0.5)
    weight = jax.random.uniform(k_w, (NUM_CLASSES, HIDDEN), jnp.float32, -bound, bound)
    bias = jax.random.uniform(k_b, (NUM_CLASSES,), jnp.float32, -bound, bound)

    # One-time parameter prep (transpose + bf16 + lane padding), outside forward.
    w_pad, b_pad = prepare_params(weight, bias)

    seed = 1234
    logits = mock_model_forward(pixel_values, w_pad, b_pad, seed)
    logits = jax.block_until_ready(logits)
    assert logits.shape == (2, NUM_CLASSES), logits.shape
    assert bool(jnp.all(jnp.isfinite(logits))), "non-finite logits"

    # Self-consistency check: the debug variant also emits the in-kernel features,
    # so the linear layer can be verified against plain JAX with the SAME features.
    # TODO(synk): torch.randn's exact Philox stream is not reproducible in-kernel;
    # features are distributionally equivalent standard normals instead.
    logits_dbg, feats = mock_forward_pallas(
        seed, w_pad, b_pad, pixel_values.shape[0], emit_features=True
    )
    logits_dbg = jax.block_until_ready(logits_dbg)
    assert feats.shape == (2, HIDDEN), feats.shape
    assert bool(jnp.all(jnp.isfinite(feats))), "non-finite features"

    # Reference applies the same bf16 rounding the kernel uses on the MXU path.
    feats_bf = feats.astype(jnp.bfloat16).astype(jnp.float32)
    w_bf = weight.astype(jnp.bfloat16).astype(jnp.float32)
    ref = feats_bf @ w_bf.T + bias
    assert jnp.allclose(logits_dbg, ref, atol=1e-2, rtol=1e-2), "mismatch vs reference"

    # Loose distributional sanity check on the generated features (~N(0, 1)).
    f_mean = float(jnp.mean(feats))
    f_std = float(jnp.std(feats))
    assert abs(f_mean) < 0.2, f_mean
    assert 0.8 < f_std < 1.2, f_std

    print("KERNEL_OK")
</pallas_src>

<mosaic_0001>
module attributes {stable_mosaic.version = 11 : i64} {
  func.func @kernel(%arg0: i32, %arg1: memref<768x128xbf16, #tpu.memory_space<vmem>>, %arg2: memref<1x128xf32, #tpu.memory_space<vmem>>, %arg3: memref<8x128xf32, #tpu.memory_space<vmem>>) attributes {dimension_semantics = [#tpu.dimension_semantics<parallel>], iteration_bounds = array<i64: 1>, scalar_prefetch = 0 : i64, scratch_operands = 0 : i64, tpu.core_type = #tpu.core_type<tc>, window_params = [{pipeline_mode = #tpu.pipeline_mode<synchronous>, transform_indices = @transform_0, window_bounds = array<i64: 768, 128>}, {pipeline_mode = #tpu.pipeline_mode<synchronous>, transform_indices = @transform_1, window_bounds = array<i64: 1, 128>}, {transform_indices = @transform_2, window_bounds = array<i64: 8, 128>}]} {
    %c8_i32 = arith.constant 8 : i32
    %0 = arith.muli %arg0, %c8_i32 : i32
    %cst = arith.constant 0.000000e+00 : f32
    %1 = vector.broadcast %cst : f32 to vector<8x128xf32>
    %2 = tpu.iota {dimensions = array<i32: 0>} : vector<8x128xi32>
    %3 = vector.broadcast %0 : i32 to vector<8x128xi32>
    %4 = arith.addi %2, %3 : vector<8x128xi32>
    %5 = tpu.iota {dimensions = array<i32: 1>} : vector<8x128xi32>
    %c0_i32 = arith.constant 0 : i32
    %6 = vector.broadcast %c0_i32 : i32 to vector<8x128xi32>
    %7 = arith.addi %5, %6 : vector<8x128xi32>
    %c768_i32 = arith.constant 768 : i32
    %8 = vector.broadcast %c768_i32 : i32 to vector<8x128xi32>
    %9 = arith.muli %4, %8 : vector<8x128xi32>
    %10 = arith.addi %9, %7 : vector<8x128xi32>
    %c-1640531527_i32 = arith.constant -1640531527 : i32
    %11 = vector.broadcast %c-1640531527_i32 : i32 to vector<8x128xi32>
    %12 = arith.muli %10, %11 : vector<8x128xi32>
    %c-1969899578_i32 = arith.constant -1969899578 : i32
    %13 = vector.broadcast %c-1969899578_i32 : i32 to vector<8x128xi32>
    %14 = arith.addi %12, %13 : vector<8x128xi32>
    %c1759714724_i32 = arith.constant 1759714724 : i32
    %15 = vector.broadcast %c1759714724_i32 : i32 to vector<8x128xi32>
    %16 = arith.xori %14, %15 : vector<8x128xi32>
    %c16_i32 = arith.constant 16 : i32
    %17 = vector.broadcast %c16_i32 : i32 to vector<8x128xi32>
    %18 = arith.shrsi %16, %17 : vector<8x128xi32>
    %c65535_i32 = arith.constant 65535 : i32
    %19 = vector.broadcast %c65535_i32 : i32 to vector<8x128xi32>
    %20 = arith.andi %18, %19 : vector<8x128xi32>
    %21 = arith.xori %16, %20 : vector<8x128xi32>
    %c2146121005_i32 = arith.constant 2146121005 : i32
    %22 = vector.broadcast %c2146121005_i32 : i32 to vector<8x128xi32>
    %23 = arith.muli %21, %22 : vector<8x128xi32>
    %c15_i32 = arith.constant 15 : i32
    %24 = vector.broadcast %c15_i32 : i32 to vector<8x128xi32>
    %25 = arith.shrsi %23, %24 : vector<8x128xi32>
    %c131071_i32 = arith.constant 131071 : i32
    %26 = vector.broadcast %c131071_i32 : i32 to vector<8x128xi32>
    %27 = arith.andi %25, %26 : vector<8x128xi32>
    %28 = arith.xori %23, %27 : vector<8x128xi32>
    %c-2073254261_i32 = arith.constant -2073254261 : i32
    %29 = vector.broadcast %c-2073254261_i32 : i32 to vector<8x128xi32>
    %30 = arith.muli %28, %29 : vector<8x128xi32>
    %c16_i32_0 = arith.constant 16 : i32
    %31 = vector.broadcast %c16_i32_0 : i32 to vector<8x128xi32>
    %32 = arith.shrsi %30, %31 : vector<8x128xi32>
    %c65535_i32_1 = arith.constant 65535 : i32
    %33 = vector.broadcast %c65535_i32_1 : i32 to vector<8x128xi32>
    %34 = arith.andi %32, %33 : vector<8x128xi32>
    %35 = arith.xori %30, %34 : vector<8x128xi32>
    %c8388607_i32 = arith.constant 8388607 : i32
    %36 = vector.broadcast %c8388607_i32 : i32 to vector<8x128xi32>
    %37 = arith.andi %35, %36 : vector<8x128xi32>
    %38 = arith.sitofp %37 : vector<8x128xi32> to vector<8x128xf32>
    %cst_2 = arith.constant 1.1920929E-7 : f32
    %39 = vector.broadcast %cst_2 : f32 to vector<8x128xf32>
    %40 = arith.mulf %38, %39 : vector<8x128xf32>
    %cst_3 = arith.constant 5.96046448E-8 : f32
    %41 = vector.broadcast %cst_3 : f32 to vector<8x128xf32>
    %42 = arith.addf %40, %41 : vector<8x128xf32>
    %c-1255572915_i32 = arith.constant -1255572915 : i32
    %43 = vector.broadcast %c-1255572915_i32 : i32 to vector<8x128xi32>
    %44 = arith.xori %14, %43 : vector<8x128xi32>
    %c16_i32_4 = arith.constant 16 : i32
    %45 = vector.broadcast %c16_i32_4 : i32 to vector<8x128xi32>
    %46 = arith.shrsi %44, %45 : vector<8x128xi32>
    %c65535_i32_5 = arith.constant 65535 : i32
    %47 = vector.broadcast %c65535_i32_5 : i32 to vector<8x128xi32>
    %48 = arith.andi %46, %47 : vector<8x128xi32>
    %49 = arith.xori %44, %48 : vector<8x128xi32>
    %c2146121005_i32_6 = arith.constant 2146121005 : i32
    %50 = vector.broadcast %c2146121005_i32_6 : i32 to vector<8x128xi32>
    %51 = arith.muli %49, %50 : vector<8x128xi32>
    %c15_i32_7 = arith.constant 15 : i32
    %52 = vector.broadcast %c15_i32_7 : i32 to vector<8x128xi32>
    %53 = arith.shrsi %51, %52 : vector<8x128xi32>
    %c131071_i32_8 = arith.constant 131071 : i32
    %54 = vector.broadcast %c131071_i32_8 : i32 to vector<8x128xi32>
    %55 = arith.andi %53, %54 : vector<8x128xi32>
    %56 = arith.xori %51, %55 : vector<8x128xi32>
    %c-2073254261_i32_9 = arith.constant -2073254261 : i32
    %57 = vector.broadcast %c-2073254261_i32_9 : i32 to vector<8x128xi32>
    %58 = arith.muli %56, %57 : vector<8x128xi32>
    %c16_i32_10 = arith.constant 16 : i32
    %59 = vector.broadcast %c16_i32_10 : i32 to vector<8x128xi32>
    %60 = arith.shrsi %58, %59 : vector<8x128xi32>
    %c65535_i32_11 = arith.constant 65535 : i32
    %61 = vector.broadcast %c65535_i32_11 : i32 to vector<8x128xi32>
    %62 = arith.andi %60, %61 : vector<8x128xi32>
    %63 = arith.xori %58, %62 : vector<8x128xi32>
    %c8388607_i32_12 = arith.constant 8388607 : i32
    %64 = vector.broadcast %c8388607_i32_12 : i32 to vector<8x128xi32>
    %65 = arith.andi %63, %64 : vector<8x128xi32>
    %66 = arith.sitofp %65 : vector<8x128xi32> to vector<8x128xf32>
    %cst_13 = arith.constant 1.1920929E-7 : f32
    %67 = vector.broadcast %cst_13 : f32 to vector<8x128xf32>
    %68 = arith.mulf %66, %67 : vector<8x128xf32>
    %cst_14 = arith.constant 5.96046448E-8 : f32
    %69 = vector.broadcast %cst_14 : f32 to vector<8x128xf32>
    %70 = arith.addf %68, %69 : vector<8x128xf32>
    %71 = math.log %42 : vector<8x128xf32>
    %cst_15 = arith.constant -2.000000e+00 : f32
    %72 = vector.broadcast %cst_15 : f32 to vector<8x128xf32>
    %73 = arith.mulf %72, %71 : vector<8x128xf32>
    %74 = math.sqrt %73 : vector<8x128xf32>
    %cst_16 = arith.constant 6.28318548 : f32
    %75 = vector.broadcast %cst_16 : f32 to vector<8x128xf32>
    %76 = arith.mulf %75, %70 : vector<8x128xf32>
    %77 = math.cos %76 : vector<8x128xf32>
    %78 = arith.mulf %74, %77 : vector<8x128xf32>
    %79 = arith.truncf %78 : vector<8x128xf32> to vector<8x128xbf16>
    %c0 = arith.constant 0 : index
    %c0_17 = arith.constant 0 : index
    %80 = vector.load %arg1[%c0, %c0_17] : memref<768x128xbf16, #tpu.memory_space<vmem>>, vector<128x128xbf16>
    %cst_18 = arith.constant dense<0.000000e+00> : vector<8x128xf32>
    %81 = tpu.matmul %79, %80, %cst_18 {dimension_numbers = #tpu.dot_dimension_numbers<[1], [0], [0], [1], [0, 0, 1, 1], [], []>} : vector<8x128xbf16>, vector<128x128xbf16>, vector<8x128xf32> -> vector<8x128xf32>
    %82 = arith.addf %1, %81 : vector<8x128xf32>
    %83 = tpu.iota {dimensions = array<i32: 0>} : vector<8x128xi32>
    %84 = vector.broadcast %0 : i32 to vector<8x128xi32>
    %85 = arith.addi %83, %84 : vector<8x128xi32>
    %86 = tpu.iota {dimensions = array<i32: 1>} : vector<8x128xi32>
    %c128_i32 = arith.constant 128 : i32
    %87 = vector.broadcast %c128_i32 : i32 to vector<8x128xi32>
    %88 = arith.addi %86, %87 : vector<8x128xi32>
    %c768_i32_19 = arith.constant 768 : i32
    %89 = vector.broadcast %c768_i32_19 : i32 to vector<8x128xi32>
    %90 = arith.muli %85, %89 : vector<8x128xi32>
    %91 = arith.addi %90, %88 : vector<8x128xi32>
    %c-1640531527_i32_20 = arith.constant -1640531527 : i32
    %92 = vector.broadcast %c-1640531527_i32_20 : i32 to vector<8x128xi32>
    %93 = arith.muli %91, %92 : vector<8x128xi32>
    %c-1969899578_i32_21 = arith.constant -1969899578 : i32
    %94 = vector.broadcast %c-1969899578_i32_21 : i32 to vector<8x128xi32>
    %95 = arith.addi %93, %94 : vector<8x128xi32>
    %c1759714724_i32_22 = arith.constant 1759714724 : i32
    %96 = vector.broadcast %c1759714724_i32_22 : i32 to vector<8x128xi32>
    %97 = arith.xori %95, %96 : vector<8x128xi32>
    %c16_i32_23 = arith.constant 16 : i32
    %98 = vector.broadcast %c16_i32_23 : i32 to vector<8x128xi32>
    %99 = arith.shrsi %97, %98 : vector<8x128xi32>
    %c65535_i32_24 = arith.constant 65535 : i32
    %100 = vector.broadcast %c65535_i32_24 : i32 to vector<8x128xi32>
    %101 = arith.andi %99, %100 : vector<8x128xi32>
    %102 = arith.xori %97, %101 : vector<8x128xi32>
    %c2146121005_i32_25 = arith.constant 2146121005 : i32
    %103 = vector.broadcast %c2146121005_i32_25 : i32 to vector<8x128xi32>
    %104 = arith.muli %102, %103 : vector<8x128xi32>
    %c15_i32_26 = arith.constant 15 : i32
    %105 = vector.broadcast %c15_i32_26 : i32 to vector<8x128xi32>
    %106 = arith.shrsi %104, %105 : vector<8x128xi32>
    %c131071_i32_27 = arith.constant 131071 : i32
    %107 = vector.broadcast %c131071_i32_27 : i32 to vector<8x128xi32>
    %108 = arith.andi %106, %107 : vector<8x128xi32>
    %109 = arith.xori %104, %108 : vector<8x128xi32>
    %c-2073254261_i32_28 = arith.constant -2073254261 : i32
    %110 = vector.broadcast %c-2073254261_i32_28 : i32 to vector<8x128xi32>
    %111 = arith.muli %109, %110 : vector<8x128xi32>
    %c16_i32_29 = arith.constant 16 : i32
    %112 = vector.broadcast %c16_i32_29 : i32 to vector<8x128xi32>
    %113 = arith.shrsi %111, %112 : vector<8x128xi32>
    %c65535_i32_30 = arith.constant 65535 : i32
    %114 = vector.broadcast %c65535_i32_30 : i32 to vector<8x128xi32>
    %115 = arith.andi %113, %114 : vector<8x128xi32>
    %116 = arith.xori %111, %115 : vector<8x128xi32>
    %c8388607_i32_31 = arith.constant 8388607 : i32
    %117 = vector.broadcast %c8388607_i32_31 : i32 to vector<8x128xi32>
    %118 = arith.andi %116, %117 : vector<8x128xi32>
    %119 = arith.sitofp %118 : vector<8x128xi32> to vector<8x128xf32>
    %cst_32 = arith.constant 1.1920929E-7 : f32
    %120 = vector.broadcast %cst_32 : f32 to vector<8x128xf32>
    %121 = arith.mulf %119, %120 : vector<8x128xf32>
    %cst_33 = arith.constant 5.96046448E-8 : f32
    %122 = vector.broadcast %cst_33 : f32 to vector<8x128xf32>
    %123 = arith.addf %121, %122 : vector<8x128xf32>
    %c-1255572915_i32_34 = arith.constant -1255572915 : i32
    %124 = vector.broadcast %c-1255572915_i32_34 : i32 to vector<8x128xi32>
    %125 = arith.xori %95, %124 : vector<8x128xi32>
    %c16_i32_35 = arith.constant 16 : i32
    %126 = vector.broadcast %c16_i32_35 : i32 to vector<8x128xi32>
    %127 = arith.shrsi %125, %126 : vector<8x128xi32>
    %c65535_i32_36 = arith.constant 65535 : i32
    %128 = vector.broadcast %c65535_i32_36 : i32 to vector<8x128xi32>
    %129 = arith.andi %127, %128 : vector<8x128xi32>
    %130 = arith.xori %125, %129 : vector<8x128xi32>
    %c2146121005_i32_37 = arith.constant 2146121005 : i32
    %131 = vector.broadcast %c2146121005_i32_37 : i32 to vector<8x128xi32>
    %132 = arith.muli %130, %131 : vector<8x128xi32>
    %c15_i32_38 = arith.constant 15 : i32
    %133 = vector.broadcast %c15_i32_38 : i32 to vector<8x128xi32>
    %134 = arith.shrsi %132, %133 : vector<8x128xi32>
    %c131071_i32_39 = arith.constant 131071 : i32
    %135 = vector.broadcast %c131071_i32_39 : i32 to vector<8x128xi32>
    %136 = arith.andi %134, %135 : vector<8x128xi32>
    %137 = arith.xori %132, %136 : vector<8x128xi32>
    %c-2073254261_i32_40 = arith.constant -2073254261 : i32
    %138 = vector.broadcast %c-2073254261_i32_40 : i32 to vector<8x128xi32>
    %139 = arith.muli %137, %138 : vector<8x128xi32>
    %c16_i32_41 = arith.constant 16 : i32
    %140 = vector.broadcast %c16_i32_41 : i32 to vector<8x128xi32>
    %141 = arith.shrsi %139, %140 : vector<8x128xi32>
    %c65535_i32_42 = arith.constant 65535 : i32
    %142 = vector.broadcast %c65535_i32_42 : i32 to vector<8x128xi32>
    %143 = arith.andi %141, %142 : vector<8x128xi32>
    %144 = arith.xori %139, %143 : vector<8x128xi32>
    %c8388607_i32_43 = arith.constant 8388607 : i32
    %145 = vector.broadcast %c8388607_i32_43 : i32 to vector<8x128xi32>
    %146 = arith.andi %144, %145 : vector<8x128xi32>
    %147 = arith.sitofp %146 : vector<8x128xi32> to vector<8x128xf32>
    %cst_44 = arith.constant 1.1920929E-7 : f32
    %148 = vector.broadcast %cst_44 : f32 to vector<8x128xf32>
    %149 = arith.mulf %147, %148 : vector<8x128xf32>
    %cst_45 = arith.constant 5.96046448E-8 : f32
    %150 = vector.broadcast %cst_45 : f32 to vector<8x128xf32>
    %151 = arith.addf %149, %150 : vector<8x128xf32>
    %152 = math.log %123 : vector<8x128xf32>
    %cst_46 = arith.constant -2.000000e+00 : f32
    %153 = vector.broadcast %cst_46 : f32 to vector<8x128xf32>
    %154 = arith.mulf %153, %152 : vector<8x128xf32>
    %155 = math.sqrt %154 : vector<8x128xf32>
    %cst_47 = arith.constant 6.28318548 : f32
    %156 = vector.broadcast %cst_47 : f32 to vector<8x128xf32>
    %157 = arith.mulf %156, %151 : vector<8x128xf32>
    %158 = math.cos %157 : vector<8x128xf32>
    %159 = arith.mulf %155, %158 : vector<8x128xf32>
    %160 = arith.truncf %159 : vector<8x128xf32> to vector<8x128xbf16>
    %c128 = arith.constant 128 : index
    %c0_48 = arith.constant 0 : index
    %161 = vector.load %arg1[%c128, %c0_48] : memref<768x128xbf16, #tpu.memory_space<vmem>>, vector<128x128xbf16>
    %cst_49 = arith.constant dense<0.000000e+00> : vector<8x128xf32>
    %162 = tpu.matmul %160, %161, %cst_49 {dimension_numbers = #tpu.dot_dimension_numbers<[1], [0], [0], [1], [0, 0, 1, 1], [], []>} : vector<8x128xbf16>, vector<128x128xbf16>, vector<8x128xf32> -> vector<8x128xf32>
    %163 = arith.addf %82, %162 : vector<8x128xf32>
    %164 = tpu.iota {dimensions = array<i32: 0>} : vector<8x128xi32>
    %165 = vector.broadcast %0 : i32 to vector<8x128xi32>
    %166 = arith.addi %164, %165 : vector<8x128xi32>
    %167 = tpu.iota {dimensions = array<i32: 1>} : vector<8x128xi32>
    %c256_i32 = arith.constant 256 : i32
    %168 = vector.broadcast %c256_i32 : i32 to vector<8x128xi32>
    %169 = arith.addi %167, %168 : vector<8x128xi32>
    %c768_i32_50 = arith.constant 768 : i32
    %170 = vector.broadcast %c768_i32_50 : i32 to vector<8x128xi32>
    %171 = arith.muli %166, %170 : vector<8x128xi32>
    %172 = arith.addi %171, %169 : vector<8x128xi32>
    %c-1640531527_i32_51 = arith.constant -1640531527 : i32
    %173 = vector.broadcast %c-1640531527_i32_51 : i32 to vector<8x128xi32>
    %174 = arith.muli %172, %173 : vector<8x128xi32>
    %c-1969899578_i32_52 = arith.constant -1969899578 : i32
    %175 = vector.broadcast %c-1969899578_i32_52 : i32 to vector<8x128xi32>
    %176 = arith.addi %174, %175 : vector<8x128xi32>
    %c1759714724_i32_53 = arith.constant 1759714724 : i32
    %177 = vector.broadcast %c1759714724_i32_53 : i32 to vector<8x128xi32>
    %178 = arith.xori %176, %177 : vector<8x128xi32>
    %c16_i32_54 = arith.constant 16 : i32
    %179 = vector.broadcast %c16_i32_54 : i32 to vector<8x128xi32>
    %180 = arith.shrsi %178, %179 : vector<8x128xi32>
    %c65535_i32_55 = arith.constant 65535 : i32
    %181 = vector.broadcast %c65535_i32_55 : i32 to vector<8x128xi32>
    %182 = arith.andi %180, %181 : vector<8x128xi32>
    %183 = arith.xori %178, %182 : vector<8x128xi32>
    %c2146121005_i32_56 = arith.constant 2146121005 : i32
    %184 = vector.broadcast %c2146121005_i32_56 : i32 to vector<8x128xi32>
    %185 = arith.muli %183, %184 : vector<8x128xi32>
    %c15_i32_57 = arith.constant 15 : i32
    %186 = vector.broadcast %c15_i32_57 : i32 to vector<8x128xi32>
    %187 = arith.shrsi %185, %186 : vector<8x128xi32>
    %c131071_i32_58 = arith.constant 131071 : i32
    %188 = vector.broadcast %c131071_i32_58 : i32 to vector<8x128xi32>
    %189 = arith.andi %187, %188 : vector<8x128xi32>
    %190 = arith.xori %185, %189 : vector<8x128xi32>
    %c-2073254261_i32_59 = arith.constant -2073254261 : i32
    %191 = vector.broadcast %c-2073254261_i32_59 : i32 to vector<8x128xi32>
    %192 = arith.muli %190, %191 : vector<8x128xi32>
    %c16_i32_60 = arith.constant 16 : i32
    %193 = vector.broadcast %c16_i32_60 : i32 to vector<8x128xi32>
    %194 = arith.shrsi %192, %193 : vector<8x128xi32>
    %c65535_i32_61 = arith.constant 65535 : i32
    %195 = vector.broadcast %c65535_i32_61 : i32 to vector<8x128xi32>
    %196 = arith.andi %194, %195 : vector<8x128xi32>
    %197 = arith.xori %192, %196 : vector<8x128xi32>
    %c8388607_i32_62 = arith.constant 8388607 : i32
    %198 = vector.broadcast %c8388607_i32_62 : i32 to vector<8x128xi32>
    %199 = arith.andi %197, %198 : vector<8x128xi32>
    %200 = arith.sitofp %199 : vector<8x128xi32> to vector<8x128xf32>
    %cst_63 = arith.constant 1.1920929E-7 : f32
    %201 = vector.broadcast %cst_63 : f32 to vector<8x128xf32>
    %202 = arith.mulf %200, %201 : vector<8x128xf32>
    %cst_64 = arith.constant 5.96046448E-8 : f32
    %203 = vector.broadcast %cst_64 : f32 to vector<8x128xf32>
    %204 = arith.addf %202, %203 : vector<8x128xf32>
    %c-1255572915_i32_65 = arith.constant -1255572915 : i32
    %205 = vector.broadcast %c-1255572915_i32_65 : i32 to vector<8x128xi32>
    %206 = arith.xori %176, %205 : vector<8x128xi32>
    %c16_i32_66 = arith.constant 16 : i32
    %207 = vector.broadcast %c16_i32_66 : i32 to vector<8x128xi32>
    %208 = arith.shrsi %206, %207 : vector<8x128xi32>
    %c65535_i32_67 = arith.constant 65535 : i32
    %209 = vector.broadcast %c65535_i32_67 : i32 to vector<8x128xi32>
    %210 = arith.andi %208, %209 : vector<8x128xi32>
    %211 = arith.xori %206, %210 : vector<8x128xi32>
    %c2146121005_i32_68 = arith.constant 2146121005 : i32
    %212 = vector.broadcast %c2146121005_i32_68 : i32 to vector<8x128xi32>
    %213 = arith.muli %211, %212 : vector<8x128xi32>
    %c15_i32_69 = arith.constant 15 : i32
    %214 = vector.broadcast %c15_i32_69 : i32 to vector<8x128xi32>
    %215 = arith.shrsi %213, %214 : vector<8x128xi32>
    %c131071_i32_70 = arith.constant 131071 : i32
    %216 = vector.broadcast %c131071_i32_70 : i32 to vector<8x128xi32>
    %217 = arith.andi %215, %216 : vector<8x128xi32>
    %218 = arith.xori %213, %217 : vector<8x128xi32>
    %c-2073254261_i32_71 = arith.constant -2073254261 : i32
    %219 = vector.broadcast %c-2073254261_i32_71 : i32 to vector<8x128xi32>
    %220 = arith.muli %218, %219 : vector<8x128xi32>
    %c16_i32_72 = arith.constant 16 : i32
    %221 = vector.broadcast %c16_i32_72 : i32 to vector<8x128xi32>
    %222 = arith.shrsi %220, %221 : vector<8x128xi32>
    %c65535_i32_73 = arith.constant 65535 : i32
    %223 = vector.broadcast %c65535_i32_73 : i32 to vector<8x128xi32>
    %224 = arith.andi %222, %223 : vector<8x128xi32>
    %225 = arith.xori %220, %224 : vector<8x128xi32>
    %c8388607_i32_74 = arith.constant 8388607 : i32
    %226 = vector.broadcast %c8388607_i32_74 : i32 to vector<8x128xi32>
    %227 = arith.andi %225, %226 : vector<8x128xi32>
    %228 = arith.sitofp %227 : vector<8x128xi32> to vector<8x128xf32>
    %cst_75 = arith.constant 1.1920929E-7 : f32
    %229 = vector.broadcast %cst_75 : f32 to vector<8x128xf32>
    %230 = arith.mulf %228, %229 : vector<8x128xf32>
    %cst_76 = arith.constant 5.96046448E-8 : f32
    %231 = vector.broadcast %cst_76 : f32 to vector<8x128xf32>
    %232 = arith.addf %230, %231 : vector<8x128xf32>
    %233 = math.log %204 : vector<8x128xf32>
    %cst_77 = arith.constant -2.000000e+00 : f32
    %234 = vector.broadcast %cst_77 : f32 to vector<8x128xf32>
    %235 = arith.mulf %234, %233 : vector<8x128xf32>
    %236 = math.sqrt %235 : vector<8x128xf32>
    %cst_78 = arith.constant 6.28318548 : f32
    %237 = vector.broadcast %cst_78 : f32 to vector<8x128xf32>
    %238 = arith.mulf %237, %232 : vector<8x128xf32>
    %239 = math.cos %238 : vector<8x128xf32>
    %240 = arith.mulf %236, %239 : vector<8x128xf32>
    %241 = arith.truncf %240 : vector<8x128xf32> to vector<8x128xbf16>
    %c256 = arith.constant 256 : index
    %c0_79 = arith.constant 0 : index
    %242 = vector.load %arg1[%c256, %c0_79] : memref<768x128xbf16, #tpu.memory_space<vmem>>, vector<128x128xbf16>
    %cst_80 = arith.constant dense<0.000000e+00> : vector<8x128xf32>
    %243 = tpu.matmul %241, %242, %cst_80 {dimension_numbers = #tpu.dot_dimension_numbers<[1], [0], [0], [1], [0, 0, 1, 1], [], []>} : vector<8x128xbf16>, vector<128x128xbf16>, vector<8x128xf32> -> vector<8x128xf32>
    %244 = arith.addf %163, %243 : vector<8x128xf32>
    %245 = tpu.iota {dimensions = array<i32: 0>} : vector<8x128xi32>
    %246 = vector.broadcast %0 : i32 to vector<8x128xi32>
    %247 = arith.addi %245, %246 : vector<8x128xi32>
    %248 = tpu.iota {dimensions = array<i32: 1>} : vector<8x128xi32>
    %c384_i32 = arith.constant 384 : i32
    %249 = vector.broadcast %c384_i32 : i32 to vector<8x128xi32>
    %250 = arith.addi %248, %249 : vector<8x128xi32>
    %c768_i32_81 = arith.constant 768 : i32
    %251 = vector.broadcast %c768_i32_81 : i32 to vector<8x128xi32>
    %252 = arith.muli %247, %251 : vector<8x128xi32>
    %253 = arith.addi %252, %250 : vector<8x128xi32>
    %c-1640531527_i32_82 = arith.constant -1640531527 : i32
    %254 = vector.broadcast %c-1640531527_i32_82 : i32 to vector<8x128xi32>
    %255 = arith.muli %253, %254 : vector<8x128xi32>
    %c-1969899578_i32_83 = arith.constant -1969899578 : i32
    %256 = vector.broadcast %c-1969899578_i32_83 : i32 to vector<8x128xi32>
    %257 = arith.addi %255, %256 : vector<8x128xi32>
    %c1759714724_i32_84 = arith.constant 1759714724 : i32
    %258 = vector.broadcast %c1759714724_i32_84 : i32 to vector<8x128xi32>
    %259 = arith.xori %257, %258 : vector<8x128xi32>
    %c16_i32_85 = arith.constant 16 : i32
    %260 = vector.broadcast %c16_i32_85 : i32 to vector<8x128xi32>
    %261 = arith.shrsi %259, %260 : vector<8x128xi32>
    %c65535_i32_86 = arith.constant 65535 : i32
    %262 = vector.broadcast %c65535_i32_86 : i32 to vector<8x128xi32>
    %263 = arith.andi %261, %262 : vector<8x128xi32>
    %264 = arith.xori %259, %263 : vector<8x128xi32>
    %c2146121005_i32_87 = arith.constant 2146121005 : i32
    %265 = vector.broadcast %c2146121005_i32_87 : i32 to vector<8x128xi32>
    %266 = arith.muli %264, %265 : vector<8x128xi32>
    %c15_i32_88 = arith.constant 15 : i32
    %267 = vector.broadcast %c15_i32_88 : i32 to vector<8x128xi32>
    %268 = arith.shrsi %266, %267 : vector<8x128xi32>
    %c131071_i32_89 = arith.constant 131071 : i32
    %269 = vector.broadcast %c131071_i32_89 : i32 to vector<8x128xi32>
    %270 = arith.andi %268, %269 : vector<8x128xi32>
    %271 = arith.xori %266, %270 : vector<8x128xi32>
    %c-2073254261_i32_90 = arith.constant -2073254261 : i32
    %272 = vector.broadcast %c-2073254261_i32_90 : i32 to vector<8x128xi32>
    %273 = arith.muli %271, %272 : vector<8x128xi32>
    %c16_i32_91 = arith.constant 16 : i32
    %274 = vector.broadcast %c16_i32_91 : i32 to vector<8x128xi32>
    %275 = arith.shrsi %273, %274 : vector<8x128xi32>
    %c65535_i32_92 = arith.constant 65535 : i32
    %276 = vector.broadcast %c65535_i32_92 : i32 to vector<8x128xi32>
    %277 = arith.andi %275, %276 : vector<8x128xi32>
    %278 = arith.xori %273, %277 : vector<8x128xi32>
    %c8388607_i32_93 = arith.constant 8388607 : i32
    %279 = vector.broadcast %c8388607_i32_93 : i32 to vector<8x128xi32>
    %280 = arith.andi %278, %279 : vector<8x128xi32>
    %281 = arith.sitofp %280 : vector<8x128xi32> to vector<8x128xf32>
    %cst_94 = arith.constant 1.1920929E-7 : f32
    %282 = vector.broadcast %cst_94 : f32 to vector<8x128xf32>
    %283 = arith.mulf %281, %282 : vector<8x128xf32>
    %cst_95 = arith.constant 5.96046448E-8 : f32
    %284 = vector.broadcast %cst_95 : f32 to vector<8x128xf32>
    %285 = arith.addf %283, %284 : vector<8x128xf32>
    %c-1255572915_i32_96 = arith.constant -1255572915 : i32
    %286 = vector.broadcast %c-1255572915_i32_96 : i32 to vector<8x128xi32>
    %287 = arith.xori %257, %286 : vector<8x128xi32>
    %c16_i32_97 = arith.constant 16 : i32
    %288 = vector.broadcast %c16_i32_97 : i32 to vector<8x128xi32>
    %289 = arith.shrsi %287, %288 : vector<8x128xi32>
    %c65535_i32_98 = arith.constant 65535 : i32
    %290 = vector.broadcast %c65535_i32_98 : i32 to vector<8x128xi32>
    %291 = arith.andi %289, %290 : vector<8x128xi32>
    %292 = arith.xori %287, %291 : vector<8x128xi32>
    %c2146121005_i32_99 = arith.constant 2146121005 : i32
    %293 = vector.broadcast %c2146121005_i32_99 : i32 to vector<8x128xi32>
    %294 = arith.muli %292, %293 : vector<8x128xi32>
    %c15_i32_100 = arith.constant 15 : i32
    %295 = vector.broadcast %c15_i32_100 : i32 to vector<8x128xi32>
    %296 = arith.shrsi %294, %295 : vector<8x128xi32>
    %c131071_i32_101 = arith.constant 131071 : i32
    %297 = vector.broadcast %c131071_i32_101 : i32 to vector<8x128xi32>
    %298 = arith.andi %296, %297 : vector<8x128xi32>
    %299 = arith.xori %294, %298 : vector<8x128xi32>
    %c-2073254261_i32_102 = arith.constant -2073254261 : i32
    %300 = vector.broadcast %c-2073254261_i32_102 : i32 to vector<8x128xi32>
    %301 = arith.muli %299, %300 : vector<8x128xi32>
    %c16_i32_103 = arith.constant 16 : i32
    %302 = vector.broadcast %c16_i32_103 : i32 to vector<8x128xi32>
    %303 = arith.shrsi %301, %302 : vector<8x128xi32>
    %c65535_i32_104 = arith.constant 65535 : i32
    %304 = vector.broadcast %c65535_i32_104 : i32 to vector<8x128xi32>
    %305 = arith.andi %303, %304 : vector<8x128xi32>
    %306 = arith.xori %301, %305 : vector<8x128xi32>
    %c8388607_i32_105 = arith.constant 8388607 : i32
    %307 = vector.broadcast %c8388607_i32_105 : i32 to vector<8x128xi32>
    %308 = arith.andi %306, %307 : vector<8x128xi32>
    %309 = arith.sitofp %308 : vector<8x128xi32> to vector<8x128xf32>
    %cst_106 = arith.constant 1.1920929E-7 : f32
    %310 = vector.broadcast %cst_106 : f32 to vector<8x128xf32>
    %311 = arith.mulf %309, %310 : vector<8x128xf32>
    %cst_107 = arith.constant 5.96046448E-8 : f32
    %312 = vector.broadcast %cst_107 : f32 to vector<8x128xf32>
    %313 = arith.addf %311, %312 : vector<8x128xf32>
    %314 = math.log %285 : vector<8x128xf32>
    %cst_108 = arith.constant -2.000000e+00 : f32
    %315 = vector.broadcast %cst_108 : f32 to vector<8x128xf32>
    %316 = arith.mulf %315, %314 : vector<8x128xf32>
    %317 = math.sqrt %316 : vector<8x128xf32>
    %cst_109 = arith.constant 6.28318548 : f32
    %318 = vector.broadcast %cst_109 : f32 to vector<8x128xf32>
    %319 = arith.mulf %318, %313 : vector<8x128xf32>
    %320 = math.cos %319 : vector<8x128xf32>
    %321 = arith.mulf %317, %320 : vector<8x128xf32>
    %322 = arith.truncf %321 : vector<8x128xf32> to vector<8x128xbf16>
    %c384 = arith.constant 384 : index
    %c0_110 = arith.constant 0 : index
    %323 = vector.load %arg1[%c384, %c0_110] : memref<768x128xbf16, #tpu.memory_space<vmem>>, vector<128x128xbf16>
    %cst_111 = arith.constant dense<0.000000e+00> : vector<8x128xf32>
    %324 = tpu.matmul %322, %323, %cst_111 {dimension_numbers = #tpu.dot_dimension_numbers<[1], [0], [0], [1], [0, 0, 1, 1], [], []>} : vector<8x128xbf16>, vector<128x128xbf16>, vector<8x128xf32> -> vector<8x128xf32>
    %325 = arith.addf %244, %324 : vector<8x128xf32>
    %326 = tpu.iota {dimensions = array<i32: 0>} : vector<8x128xi32>
    %327 = vector.broadcast %0 : i32 to vector<8x128xi32>
    %328 = arith.addi %326, %327 : vector<8x128xi32>
    %329 = tpu.iota {dimensions = array<i32: 1>} : vector<8x128xi32>
    %c512_i32 = arith.constant 512 : i32
    %330 = vector.broadcast %c512_i32 : i32 to vector<8x128xi32>
    %331 = arith.addi %329, %330 : vector<8x128xi32>
    %c768_i32_112 = arith.constant 768 : i32
    %332 = vector.broadcast %c768_i32_112 : i32 to vector<8x128xi32>
    %333 = arith.muli %328, %332 : vector<8x128xi32>
    %334 = arith.addi %333, %331 : vector<8x128xi32>
    %c-1640531527_i32_113 = arith.constant -1640531527 : i32
    %335 = vector.broadcast %c-1640531527_i32_113 : i32 to vector<8x128xi32>
    %336 = arith.muli %334, %335 : vector<8x128xi32>
    %c-1969899578_i32_114 = arith.constant -1969899578 : i32
    %337 = vector.broadcast %c-1969899578_i32_114 : i32 to vector<8x128xi32>
    %338 = arith.addi %336, %337 : vector<8x128xi32>
    %c1759714724_i32_115 = arith.constant 1759714724 : i32
    %339 = vector.broadcast %c1759714724_i32_115 : i32 to vector<8x128xi32>
    %340 = arith.xori %338, %339 : vector<8x128xi32>
    %c16_i32_116 = arith.constant 16 : i32
    %341 = vector.broadcast %c16_i32_116 : i32 to vector<8x128xi32>
    %342 = arith.shrsi %340, %341 : vector<8x128xi32>
    %c65535_i32_117 = arith.constant 65535 : i32
    %343 = vector.broadcast %c65535_i32_117 : i32 to vector<8x128xi32>
    %344 = arith.andi %342, %343 : vector<8x128xi32>
    %345 = arith.xori %340, %344 : vector<8x128xi32>
    %c2146121005_i32_118 = arith.constant 2146121005 : i32
    %346 = vector.broadcast %c2146121005_i32_118 : i32 to vector<8x128xi32>
    %347 = arith.muli %345, %346 : vector<8x128xi32>
    %c15_i32_119 = arith.constant 15 : i32
    %348 = vector.broadcast %c15_i32_119 : i32 to vector<8x128xi32>
    %349 = arith.shrsi %347, %348 : vector<8x128xi32>
    %c131071_i32_120 = arith.constant 131071 : i32
    %350 = vector.broadcast %c131071_i32_120 : i32 to vector<8x128xi32>
    %351 = arith.andi %349, %350 : vector<8x128xi32>
    %352 = arith.xori %347, %351 : vector<8x128xi32>
    %c-2073254261_i32_121 = arith.constant -2073254261 : i32
    %353 = vector.broadcast %c-2073254261_i32_121 : i32 to vector<8x128xi32>
    %354 = arith.muli %352, %353 : vector<8x128xi32>
    %c16_i32_122 = arith.constant 16 : i32
    %355 = vector.broadcast %c16_i32_122 : i32 to vector<8x128xi32>
    %356 = arith.shrsi %354, %355 : vector<8x128xi32>
    %c65535_i32_123 = arith.constant 65535 : i32
    %357 = vector.broadcast %c65535_i32_123 : i32 to vector<8x128xi32>
    %358 = arith.andi %356, %357 : vector<8x128xi32>
    %359 = arith.xori %354, %358 : vector<8x128xi32>
    %c8388607_i32_124 = arith.constant 8388607 : i32
    %360 = vector.broadcast %c8388607_i32_124 : i32 to vector<8x128xi32>
    %361 = arith.andi %359, %360 : vector<8x128xi32>
    %362 = arith.sitofp %361 : vector<8x128xi32> to vector<8x128xf32>
    %cst_125 = arith.constant 1.1920929E-7 : f32
    %363 = vector.broadcast %cst_125 : f32 to vector<8x128xf32>
    %364 = arith.mulf %362, %363 : vector<8x128xf32>
    %cst_126 = arith.constant 5.96046448E-8 : f32
    %365 = vector.broadcast %cst_126 : f32 to vector<8x128xf32>
    %366 = arith.addf %364, %365 : vector<8x128xf32>
    %c-1255572915_i32_127 = arith.constant -1255572915 : i32
    %367 = vector.broadcast %c-1255572915_i32_127 : i32 to vector<8x128xi32>
    %368 = arith.xori %338, %367 : vector<8x128xi32>
    %c16_i32_128 = arith.constant 16 : i32
    %369 = vector.broadcast %c16_i32_128 : i32 to vector<8x128xi32>
    %370 = arith.shrsi %368, %369 : vector<8x128xi32>
    %c65535_i32_129 = arith.constant 65535 : i32
    %371 = vector.broadcast %c65535_i32_129 : i32 to vector<8x128xi32>
    %372 = arith.andi %370, %371 : vector<8x128xi32>
    %373 = arith.xori %368, %372 : vector<8x128xi32>
    %c2146121005_i32_130 = arith.constant 2146121005 : i32
    %374 = vector.broadcast %c2146121005_i32_130 : i32 to vector<8x128xi32>
    %375 = arith.muli %373, %374 : vector<8x128xi32>
    %c15_i32_131 = arith.constant 15 : i32
    %376 = vector.broadcast %c15_i32_131 : i32 to vector<8x128xi32>
    %377 = arith.shrsi %375, %376 : vector<8x128xi32>
    %c131071_i32_132 = arith.constant 131071 : i32
    %378 = vector.broadcast %c131071_i32_132 : i32 to vector<8x128xi32>
    %379 = arith.andi %377, %378 : vector<8x128xi32>
    %380 = arith.xori %375, %379 : vector<8x128xi32>
    %c-2073254261_i32_133 = arith.constant -2073254261 : i32
    %381 = vector.broadcast %c-2073254261_i32_133 : i32 to vector<8x128xi32>
    %382 = arith.muli %380, %381 : vector<8x128xi32>
    %c16_i32_134 = arith.constant 16 : i32
    %383 = vector.broadcast %c16_i32_134 : i32 to vector<8x128xi32>
    %384 = arith.shrsi %382, %383 : vector<8x128xi32>
    %c65535_i32_135 = arith.constant 65535 : i32
    %385 = vector.broadcast %c65535_i32_135 : i32 to vector<8x128xi32>
    %386 = arith.andi %384, %385 : vector<8x128xi32>
    %387 = arith.xori %382, %386 : vector<8x128xi32>
    %c8388607_i32_136 = arith.constant 8388607 : i32
    %388 = vector.broadcast %c8388607_i32_136 : i32 to vector<8x128xi32>
    %389 = arith.andi %387, %388 : vector<8x128xi32>
    %390 = arith.sitofp %389 : vector<8x128xi32> to vector<8x128xf32>
    %cst_137 = arith.constant 1.1920929E-7 : f32
    %391 = vector.broadcast %cst_137 : f32 to vector<8x128xf32>
    %392 = arith.mulf %390, %391 : vector<8x128xf32>
    %cst_138 = arith.constant 5.96046448E-8 : f32
    %393 = vector.broadcast %cst_138 : f32 to vector<8x128xf32>
    %394 = arith.addf %392, %393 : vector<8x128xf32>
    %395 = math.log %366 : vector<8x128xf32>
    %cst_139 = arith.constant -2.000000e+00 : f32
    %396 = vector.broadcast %cst_139 : f32 to vector<8x128xf32>
    %397 = arith.mulf %396, %395 : vector<8x128xf32>
    %398 = math.sqrt %397 : vector<8x128xf32>
    %cst_140 = arith.constant 6.28318548 : f32
    %399 = vector.broadcast %cst_140 : f32 to vector<8x128xf32>
    %400 = arith.mulf %399, %394 : vector<8x128xf32>
    %401 = math.cos %400 : vector<8x128xf32>
    %402 = arith.mulf %398, %401 : vector<8x128xf32>
    %403 = arith.truncf %402 : vector<8x128xf32> to vector<8x128xbf16>
    %c512 = arith.constant 512 : index
    %c0_141 = arith.constant 0 : index
    %404 = vector.load %arg1[%c512, %c0_141] : memref<768x128xbf16, #tpu.memory_space<vmem>>, vector<128x128xbf16>
    %cst_142 = arith.constant dense<0.000000e+00> : vector<8x128xf32>
    %405 = tpu.matmul %403, %404, %cst_142 {dimension_numbers = #tpu.dot_dimension_numbers<[1], [0], [0], [1], [0, 0, 1, 1], [], []>} : vector<8x128xbf16>, vector<128x128xbf16>, vector<8x128xf32> -> vector<8x128xf32>
    %406 = arith.addf %325, %405 : vector<8x128xf32>
    %407 = tpu.iota {dimensions = array<i32: 0>} : vector<8x128xi32>
    %408 = vector.broadcast %0 : i32 to vector<8x128xi32>
    %409 = arith.addi %407, %408 : vector<8x128xi32>
    %410 = tpu.iota {dimensions = array<i32: 1>} : vector<8x128xi32>
    %c640_i32 = arith.constant 640 : i32
    %411 = vector.broadcast %c640_i32 : i32 to vector<8x128xi32>
    %412 = arith.addi %410, %411 : vector<8x128xi32>
    %c768_i32_143 = arith.constant 768 : i32
    %413 = vector.broadcast %c768_i32_143 : i32 to vector<8x128xi32>
    %414 = arith.muli %409, %413 : vector<8x128xi32>
    %415 = arith.addi %414, %412 : vector<8x128xi32>
    %c-1640531527_i32_144 = arith.constant -1640531527 : i32
    %416 = vector.broadcast %c-1640531527_i32_144 : i32 to vector<8x128xi32>
    %417 = arith.muli %415, %416 : vector<8x128xi32>
    %c-1969899578_i32_145 = arith.constant -1969899578 : i32
    %418 = vector.broadcast %c-1969899578_i32_145 : i32 to vector<8x128xi32>
    %419 = arith.addi %417, %418 : vector<8x128xi32>
    %c1759714724_i32_146 = arith.constant 1759714724 : i32
    %420 = vector.broadcast %c1759714724_i32_146 : i32 to vector<8x128xi32>
    %421 = arith.xori %419, %420 : vector<8x128xi32>
    %c16_i32_147 = arith.constant 16 : i32
    %422 = vector.broadcast %c16_i32_147 : i32 to vector<8x128xi32>
    %423 = arith.shrsi %421, %422 : vector<8x128xi32>
    %c65535_i32_148 = arith.constant 65535 : i32
    %424 = vector.broadcast %c65535_i32_148 : i32 to vector<8x128xi32>
    %425 = arith.andi %423, %424 : vector<8x128xi32>
    %426 = arith.xori %421, %425 : vector<8x128xi32>
    %c2146121005_i32_149 = arith.constant 2146121005 : i32
    %427 = vector.broadcast %c2146121005_i32_149 : i32 to vector<8x128xi32>
    %428 = arith.muli %426, %427 : vector<8x128xi32>
    %c15_i32_150 = arith.constant 15 : i32
    %429 = vector.broadcast %c15_i32_150 : i32 to vector<8x128xi32>
    %430 = arith.shrsi %428, %429 : vector<8x128xi32>
    %c131071_i32_151 = arith.constant 131071 : i32
    %431 = vector.broadcast %c131071_i32_151 : i32 to vector<8x128xi32>
    %432 = arith.andi %430, %431 : vector<8x128xi32>
    %433 = arith.xori %428, %432 : vector<8x128xi32>
    %c-2073254261_i32_152 = arith.constant -2073254261 : i32
    %434 = vector.broadcast %c-2073254261_i32_152 : i32 to vector<8x128xi32>
    %435 = arith.muli %433, %434 : vector<8x128xi32>
    %c16_i32_153 = arith.constant 16 : i32
    %436 = vector.broadcast %c16_i32_153 : i32 to vector<8x128xi32>
    %437 = arith.shrsi %435, %436 : vector<8x128xi32>
    %c65535_i32_154 = arith.constant 65535 : i32
    %438 = vector.broadcast %c65535_i32_154 : i32 to vector<8x128xi32>
    %439 = arith.andi %437, %438 : vector<8x128xi32>
    %440 = arith.xori %435, %439 : vector<8x128xi32>
    %c8388607_i32_155 = arith.constant 8388607 : i32
    %441 = vector.broadcast %c8388607_i32_155 : i32 to vector<8x128xi32>
    %442 = arith.andi %440, %441 : vector<8x128xi32>
    %443 = arith.sitofp %442 : vector<8x128xi32> to vector<8x128xf32>
    %cst_156 = arith.constant 1.1920929E-7 : f32
    %444 = vector.broadcast %cst_156 : f32 to vector<8x128xf32>
    %445 = arith.mulf %443, %444 : vector<8x128xf32>
    %cst_157 = arith.constant 5.96046448E-8 : f32
    %446 = vector.broadcast %cst_157 : f32 to vector<8x128xf32>
    %447 = arith.addf %445, %446 : vector<8x128xf32>
    %c-1255572915_i32_158 = arith.constant -1255572915 : i32
    %448 = vector.broadcast %c-1255572915_i32_158 : i32 to vector<8x128xi32>
    %449 = arith.xori %419, %448 : vector<8x128xi32>
    %c16_i32_159 = arith.constant 16 : i32
    %450 = vector.broadcast %c16_i32_159 : i32 to vector<8x128xi32>
    %451 = arith.shrsi %449, %450 : vector<8x128xi32>
    %c65535_i32_160 = arith.constant 65535 : i32
    %452 = vector.broadcast %c65535_i32_160 : i32 to vector<8x128xi32>
    %453 = arith.andi %451, %452 : vector<8x128xi32>
    %454 = arith.xori %449, %453 : vector<8x128xi32>
    %c2146121005_i32_161 = arith.constant 2146121005 : i32
    %455 = vector.broadcast %c2146121005_i32_161 : i32 to vector<8x128xi32>
    %456 = arith.muli %454, %455 : vector<8x128xi32>
    %c15_i32_162 = arith.constant 15 : i32
    %457 = vector.broadcast %c15_i32_162 : i32 to vector<8x128xi32>
    %458 = arith.shrsi %456, %457 : vector<8x128xi32>
    %c131071_i32_163 = arith.constant 131071 : i32
    %459 = vector.broadcast %c131071_i32_163 : i32 to vector<8x128xi32>
    %460 = arith.andi %458, %459 : vector<8x128xi32>
    %461 = arith.xori %456, %460 : vector<8x128xi32>
    %c-2073254261_i32_164 = arith.constant -2073254261 : i32
    %462 = vector.broadcast %c-2073254261_i32_164 : i32 to vector<8x128xi32>
    %463 = arith.muli %461, %462 : vector<8x128xi32>
    %c16_i32_165 = arith.constant 16 : i32
    %464 = vector.broadcast %c16_i32_165 : i32 to vector<8x128xi32>
    %465 = arith.shrsi %463, %464 : vector<8x128xi32>
    %c65535_i32_166 = arith.constant 65535 : i32
    %466 = vector.broadcast %c65535_i32_166 : i32 to vector<8x128xi32>
    %467 = arith.andi %465, %466 : vector<8x128xi32>
    %468 = arith.xori %463, %467 : vector<8x128xi32>
    %c8388607_i32_167 = arith.constant 8388607 : i32
    %469 = vector.broadcast %c8388607_i32_167 : i32 to vector<8x128xi32>
    %470 = arith.andi %468, %469 : vector<8x128xi32>
    %471 = arith.sitofp %470 : vector<8x128xi32> to vector<8x128xf32>
    %cst_168 = arith.constant 1.1920929E-7 : f32
    %472 = vector.broadcast %cst_168 : f32 to vector<8x128xf32>
    %473 = arith.mulf %471, %472 : vector<8x128xf32>
    %cst_169 = arith.constant 5.96046448E-8 : f32
    %474 = vector.broadcast %cst_169 : f32 to vector<8x128xf32>
    %475 = arith.addf %473, %474 : vector<8x128xf32>
    %476 = math.log %447 : vector<8x128xf32>
    %cst_170 = arith.constant -2.000000e+00 : f32
    %477 = vector.broadcast %cst_170 : f32 to vector<8x128xf32>
    %478 = arith.mulf %477, %476 : vector<8x128xf32>
    %479 = math.sqrt %478 : vector<8x128xf32>
    %cst_171 = arith.constant 6.28318548 : f32
    %480 = vector.broadcast %cst_171 : f32 to vector<8x128xf32>
    %481 = arith.mulf %480, %475 : vector<8x128xf32>
    %482 = math.cos %481 : vector<8x128xf32>
    %483 = arith.mulf %479, %482 : vector<8x128xf32>
    %484 = arith.truncf %483 : vector<8x128xf32> to vector<8x128xbf16>
    %c640 = arith.constant 640 : index
    %c0_172 = arith.constant 0 : index
    %485 = vector.load %arg1[%c640, %c0_172] : memref<768x128xbf16, #tpu.memory_space<vmem>>, vector<128x128xbf16>
    %cst_173 = arith.constant dense<0.000000e+00> : vector<8x128xf32>
    %486 = tpu.matmul %484, %485, %cst_173 {dimension_numbers = #tpu.dot_dimension_numbers<[1], [0], [0], [1], [0, 0, 1, 1], [], []>} : vector<8x128xbf16>, vector<128x128xbf16>, vector<8x128xf32> -> vector<8x128xf32>
    %487 = arith.addf %406, %486 : vector<8x128xf32>
    %c0_174 = arith.constant 0 : index
    %c0_175 = arith.constant 0 : index
    %488 = vector.load %arg2[%c0_174, %c0_175] : memref<1x128xf32, #tpu.memory_space<vmem>>, vector<1x128xf32>
    %489 = vector.broadcast %488 : vector<1x128xf32> to vector<8x128xf32>
    %490 = arith.addf %487, %489 : vector<8x128xf32>
    %c0_176 = arith.constant 0 : index
    %c0_177 = arith.constant 0 : index
    %491 = vector.load %arg3[%c0_176, %c0_177] : memref<8x128xf32, #tpu.memory_space<vmem>>, vector<8x128xf32>
    tpu.vector_store %arg3[%c0_176, %c0_177], %490 {strides = array<i32>} : memref<8x128xf32, #tpu.memory_space<vmem>>, vector<8x128xf32>,
    return
  }
  func.func @transform_0(%arg0: i32) -> (i32, i32) {
    %c0_i32 = arith.constant 0 : i32
    %c0_i32_0 = arith.constant 0 : i32
    %c0_i32_1 = arith.constant 0 : i32
    return %c0_i32, %c0_i32_0 : i32, i32
  }
  func.func @transform_1(%arg0: i32) -> (i32, i32) {
    %c0_i32 = arith.constant 0 : i32
    %c0_i32_0 = arith.constant 0 : i32
    %c0_i32_1 = arith.constant 0 : i32
    return %c0_i32, %c0_i32_0 : i32, i32
  }
  func.func @transform_2(%arg0: i32) -> (i32, i32) {
    %c0_i32 = arith.constant 0 : i32
    %c0_i32_0 = arith.constant 0 : i32
    return %arg0, %c0_i32 : i32, i32
  }
}

</mosaic_0001>

<llo_original>
// kernel: tpu_custom_call.1
$region0: #{tpu_custom_call.1}
  #allocation0 [shape = 'u32[]', space=smem, size = 0x4, offset = 0x4, fixed_abs, tag = 'smem constant byte address 0x4 - core index']
  #allocation1 [shape = 'u32[144,128]{1,0:T(1,128)}', space=vmem, size = 0x12000, scoped, tag = 'internal scratch']
  %s0 = inlined_call_operand.hbm [shape: bf16[768,128], index: 0, kind: input, shape index: {}]
  %s1 = inlined_call_operand.vmem [shape: f32[1,128], index: 1, kind: input, shape index: {}]
  %s2 = inlined_call_operand.hbm [shape: f32[8,128], index: 2, kind: output, shape index: {}]
  %s3 = sld [smem:[#allocation0]]
  $region22: #{tpu_custom_call.1} parent=0
    _
  %s5 = ssub.s32 1, %s3
  %s6 = scalar_select 0, %s5, %s3
  $region1: #{tpu_custom_call.1} parent=0
    #allocation2 [shape = 'u8[196608]{0}', space=vmem, size = 0x30000, scoped, tag = 'input window, operand 0, single buffered']
    #allocation3 [shape = 's32[1]{0}', space=sflag, size = 0x4, scoped, tag = 'scoped memory for tpu_custom_call.1']
    #allocation4 [shape = 's32[1]{0}', space=sflag, size = 0x4, scoped, tag = 'scoped memory for tpu_custom_call.1']
    #allocation5 [shape = 'u8[4096]{0}', space=vmem, size = 0x1000, scoped, tag = 'output window, operand 0, single buffered']
    %7 = vsyncpa [#allocation3], 0
    %8 = vsyncpa [#allocation4], 0
    // Predicated region
    $region2: #{tpu_custom_call.1} parent=1 // pred_check
      _
    $region3: #{tpu_custom_call.1} parent=1 // pred_check_branch
      %10 = sbr.rel (0) target = $region5
    $region4: #{tpu_custom_call.1} parent=1 // pred_region
      %s12 = ssub.s32 6144, 6144
      %13 = vsyncadd [#allocation3], %s12
      %s14 = sshll.u32 [#allocation2], 4
      %s15 = int_to_ptr.vmem [resolvable:$true] %s14
      %20 = dma.hbm_to_vmem [thread:$0]  %s0, 6144, %s15, [#allocation3], 64, 64, 4
    $region5: #{tpu_custom_call.1} parent=1 // pred_fallthru
      _
    // Predicated region
    $region6: #{tpu_custom_call.1} parent=1 // pred_check
      _
    $region7: #{tpu_custom_call.1} parent=1 // pred_check_branch
      %22 = sbr.rel (0) target = $region9
    $region8: #{tpu_custom_call.1} parent=1 // pred_region
      _
    $region9: #{tpu_custom_call.1} parent=1 // pred_fallthru
      _
    // Predicated region
    $region10: #{tpu_custom_call.1} parent=1 // pred_check
      _
    $region11: #{tpu_custom_call.1} parent=1 // pred_check_branch
      %24 = sbr.rel (0) target = $region13
    $region12: #{tpu_custom_call.1} parent=1 // pred_region
      %25 = dma.done [#allocation3], 6144
    $region13: #{tpu_custom_call.1} parent=1 // pred_fallthru
      _
    %s27 = smul.u32 0, 8
    %v28 = vlaneseq
    %v29 = vshrl.u32 %v28, 7
    %v30 = vstv %s27
    %v31 = vadd.s32 %v29, %v30
    %v32 = vlaneseq
    %v33 = vand.u32 %v32, 127
    %v34 = vmul.u32 %v31, 768
    %v35 = vadd.s32 %v34, %v33
    %v36 = vmul.u32 %v35, 2654435769
    %v37 = vadd.s32 %v36, 2325067718
    %v38 = vxor.u32 %v37, 1759714724
    %v39 = vshra.s32 %v38, 16
    %v40 = vand.u32 %v39, 65535
    %v41 = vxor.u32 %v38, %v40
    %v42 = vmul.u32 %v41, 2146121005
    %v43 = vshra.s32 %v42, 15
    %v44 = vand.u32 %v43, 131071
    %v45 = vxor.u32 %v42, %v44
    %v46 = vmul.u32 %v45, 2221713035
    %v47 = vshra.s32 %v46, 16
    %v48 = vand.u32 %v47, 65535
    %v49 = vxor.u32 %v46, %v48
    %v50 = vand.u32 %v49, 8388607
    %v51 = vcvt.s32.f32 %v50
    %v52 = vmul.f32 %v51, 1.1920929e-07
    %v53 = vadd.f32 %v52, 5.9604645e-08
    %v54 = vxor.u32 %v37, 3039394381
    %v55 = vshra.s32 %v54, 16
    %v56 = vand.u32 %v55, 65535
    %v57 = vxor.u32 %v54, %v56
    %v58 = vmul.u32 %v57, 2146121005
    %v59 = vshra.s32 %v58, 15
    %v60 = vand.u32 %v59, 131071
    %v61 = vxor.u32 %v58, %v60
    %v62 = vmul.u32 %v61, 2221713035
    %v63 = vshra.s32 %v62, 16
    %v64 = vand.u32 %v63, 65535
    %v65 = vxor.u32 %v62, %v64
    %v66 = vand.u32 %v65, 8388607
    %v67 = vcvt.s32.f32 %v66
    %v68 = vmul.f32 %v67, 1.1920929e-07
    %v69 = vadd.f32 %v68, 5.9604645e-08
    %v70 = vlog2.pop %v53
    %v71 = vmul.f32 %v70, 0.6931472
    %v72 = vmul.f32 %v71, -2.0
    %v73 = vrsqrt.pop %v72
    %v74 = vmul.f32 %v72, %v73
    %vm75 = vcmp.eq.f32.partialorder %v72, inf
    %v76 = vsel %vm75, %v72, %v74
    %vm77 = vcmp.eq.f32.partialorder %v72, 0.0
    %v78 = vand.u32 %v72, 2147483648
    %v79 = vsel %vm77, %v78, %v76
    %v80 = vmul.f32 %v69, 6.2831855
    %v81 = vand.u32 2147483647, %v80
    %vm82 = vcmp.le.f32.partialorder %v81, 0.7853982
    %vm83 = vcmp.lt.s32.totalorder %v80, 0
    %v84 = vand.u32 %v80, 2139095040
    %v85 = vshrl.u32 %v84, 23
    %v86 = vsub.s32 %v85, 127
    %v87 = vand.u32 2147483647, %v80
    %v88 = vand.u32 %v87, 8388607
    %v89 = vor.u32 %v88, 8388608
    %v90 = vsub.s32 0, %v89
    %v91 = vadd.s32 %v86, 1
    %vm92 = vcmp.gt.s32.totalorder %v91, 0
    %v93 = vsel %vm92, %v91, 0
    %v94 = vshrl.u32 %v93, 5
    %v95 = vand.u32 %v93, 31
    %v96 = vsub.s32 32, %v95
    %v97 = vshrl.u32 683565275, %v96
    %v98 = vshll.u32 683565275, %v95
    %v99 = vshrl.u32 2475754826, %v96
    %v100 = vor.u32 %v98, %v99
    %v101 = vshll.u32 2475754826, %v95
    %v102 = vshrl.u32 2131351028, %v96
    %v103 = vor.u32 %v101, %v102
    %v104 = vshll.u32 2131351028, %v95
    %v105 = vshrl.u32 2102212464, %v96
    %v106 = vor.u32 %v104, %v105
    %v107 = vshll.u32 2102212464, %v95
    %v108 = vshrl.u32 920167782, %v96
    %v109 = vor.u32 %v107, %v108
    %v110 = vshll.u32 920167782, %v95
    %v111 = vshrl.u32 1326507024, %v96
    %v112 = vor.u32 %v110, %v111
    %vm113 = vcmp.lt.s32.totalorder %v94, 1
    %vm114 = vcmp.lt.s32.totalorder %v94, 2
    %vm115 = vcmp.lt.s32.totalorder %v94, 3
    %vm116 = vcmp.lt.s32.totalorder %v94, 4
    %v117 = vsel %vm113, %v97, %v100
    %v118 = vsel %vm116, %v106, 2102212464
    %v119 = vsel %vm115, %v103, %v118
    %v120 = vsel %vm114, %v117, %v119
    %v121 = vsel %vm113, %v100, %v103
    %v122 = vsel %vm116, %v109, 920167782
    %v123 = vsel %vm115, %v106, %v122
    %v124 = vsel %vm114, %v121, %v123
    %v125 = vsel %vm113, %v103, %v106
    %v126 = vsel %vm116, %v112, 1326507024
    %v127 = vsel %vm115, %v109, %v126
    %v128 = vsel %vm114, %v125, %v127
    %v129 = vshll.u32 %v89, 8
    %v130 = vmul.u32.u64.compose %v129, %v128
    %v131 = vextract.low.u32 %v130
    %v132 = vextract.high.u32 %v130
    %v133 = vmul.u32.u64.compose %v129, %v124
    %v134 = vextract.low.u32 %v133
    %v135 = vextract.high.u32 %v133
    %v136 = vmul.u32 %v129, %v120
    %v137 = vadd.s32 %v132, %v134
    %vm138 = vc.u32 %v132, %v134
    %v139 = vadd.s32 %v135, 1
    %v140 = vsel %vm138, %v139, %v135
    %v141 = vadd.s32 %v136, %v140
    %v142 = vadd.s32 %v141, 536870912
    %v143 = vshrl.u32 %v142, 30
    %v144 = vshll.u32 %v143, 30
    %v145 = vsub.s32 %v141, %v144
    %vm146 = vcmp.lt.s32.totalorder %v145, 0
    %v147 = vsub.s32 0, %v145
    %v148 = vsel %vm146, %v147, %v145
    %v149 = vclz %v148
    %v150 = vsub.s32 %v149, 2
    %vm151 = vcmp.gt.s32.totalorder 0, %v150
    %v152 = vsel %vm151, 0, %v150
    %v153 = vsub.s32 32, %v152
    %v154 = vshll.u32 %v145, %v152
    %v155 = vshrl.u32 %v137, %v153
    %v156 = vor.u32 %v154, %v155
    %v157 = vsub.s32 4294967266, %v152
    %v158 = vadd.s32 %v157, 127
    %v159 = vshll.u32 %v158, 23
    %v160 = vor.u32 4788187, %v159
    %v161 = vand.u32 2147483647, %v160
    %v163 = vcvt.s32.f32 %v156
    %v164 = vmul.f32 %v163, %v161
    %v165 = vxor.u32 %v164, 2147483648
    %v166 = vsel %vm83, %v165, %v164
    %v167 = vsub.s32 4, %v143
    %v168 = vsel %vm83, %v167, %v143
    %v169 = vsel %vm82, %v80, %v166
    %v170 = vsel %vm82, 0, %v168
    %v171 = vcosq.f32.pop %v169
    %v172 = vsinq.f32.pop %v169
    %vm173 = vweird.f32 %v80
    %v174 = vand.u32 %v170, 3
    %vm175 = vcmp.lt.s32.totalorder %v174, 2
    %vm176 = vcmp.eq.s32.totalorder %v174, 0
    %v177 = vxor.u32 %v172, 2147483648
    %v178 = vsel %vm176, %v171, %v177
    %vm179 = vcmp.eq.s32.totalorder %v174, 2
    %v180 = vxor.u32 %v171, 2147483648
    %v181 = vsel %vm179, %v180, %v172
    %v182 = vsel %vm175, %v178, %v181
    %v183 = vsel %vm173, nan, %v182
    %v184 = vmul.f32 %v79, %v183
    %v185 = vpack.c.bf16 %v184, %v184
    %v186 = vld [vmem:[#allocation2] sm:$0xf]
    %v187 = vld [vmem:[#allocation2 + $0x4] sm:$0xf]
    %v188 = vld [vmem:[#allocation2 + $0x8] sm:$0xf]
    %v189 = vld [vmem:[#allocation2 + $0xc] sm:$0xf]
    %v190 = vld [vmem:[#allocation2 + $0x10] sm:$0xf]
    %v191 = vld [vmem:[#allocation2 + $0x14] sm:$0xf]
    %v192 = vld [vmem:[#allocation2 + $0x18] sm:$0xf]
    %v193 = vld [vmem:[#allocation2 + $0x1c] sm:$0xf]
    %v194 = vld [vmem:[#allocation2 + $0x20] sm:$0xf]
    %v195 = vld [vmem:[#allocation2 + $0x24] sm:$0xf]
    %v196 = vld [vmem:[#allocation2 + $0x28] sm:$0xf]
    %v197 = vld [vmem:[#allocation2 + $0x2c] sm:$0xf]
    %v198 = vld [vmem:[#allocation2 + $0x30] sm:$0xf]
    %v199 = vld [vmem:[#allocation2 + $0x34] sm:$0xf]
    %v200 = vld [vmem:[#allocation2 + $0x38] sm:$0xf]
    %v201 = vld [vmem:[#allocation2 + $0x3c] sm:$0xf]
    %v202 = vadd.s32 %v33, 128
    %v203 = vadd.s32 %v34, %v202
    %v204 = vmul.u32 %v203, 2654435769
    %v205 = vadd.s32 %v204, 2325067718
    %v206 = vxor.u32 %v205, 1759714724
    %v207 = vshra.s32 %v206, 16
    %v208 = vand.u32 %v207, 65535
    %v209 = vxor.u32 %v206, %v208
    %v210 = vmul.u32 %v209, 2146121005
    %v211 = vshra.s32 %v210, 15
    %v212 = vand.u32 %v211, 131071
    %v213 = vxor.u32 %v210, %v212
    %v214 = vmul.u32 %v213, 2221713035
    %v215 = vshra.s32 %v214, 16
    %v216 = vand.u32 %v215, 65535
    %v217 = vxor.u32 %v214, %v216
    %v218 = vand.u32 %v217, 8388607
    %v219 = vcvt.s32.f32 %v218
    %v220 = vmul.f32 %v219, 1.1920929e-07
    %v221 = vadd.f32 %v220, 5.9604645e-08
    %v222 = vxor.u32 %v205, 3039394381
    %v223 = vshra.s32 %v222, 16
    %v224 = vand.u32 %v223, 65535
    %v225 = vxor.u32 %v222, %v224
    %v226 = vmul.u32 %v225, 2146121005
    %v227 = vshra.s32 %v226, 15
    %v228 = vand.u32 %v227, 131071
    %v229 = vxor.u32 %v226, %v228
    %v230 = vmul.u32 %v229, 2221713035
    %v231 = vshra.s32 %v230, 16
    %v232 = vand.u32 %v231, 65535
    %v233 = vxor.u32 %v230, %v232
    %v234 = vand.u32 %v233, 8388607
    %v235 = vcvt.s32.f32 %v234
    %v236 = vmul.f32 %v235, 1.1920929e-07
    %v237 = vadd.f32 %v236, 5.9604645e-08
    %v238 = vlog2.pop %v221
    %v239 = vmul.f32 %v238, 0.6931472
    %v240 = vmul.f32 %v239, -2.0
    %v241 = vrsqrt.pop %v240
    %v242 = vmul.f32 %v240, %v241
    %vm243 = vcmp.eq.f32.partialorder %v240, inf
    %v244 = vsel %vm243, %v240, %v242
    %vm245 = vcmp.eq.f32.partialorder %v240, 0.0
    %v246 = vand.u32 %v240, 2147483648
    %v247 = vsel %vm245, %v246, %v244
    %v248 = vmul.f32 %v237, 6.2831855
    %v249 = vand.u32 2147483647, %v248
    %vm250 = vcmp.le.f32.partialorder %v249, 0.7853982
    %vm251 = vcmp.lt.s32.totalorder %v248, 0
    %v252 = vand.u32 %v248, 2139095040
    %v253 = vshrl.u32 %v252, 23
    %v254 = vsub.s32 %v253, 127
    %v255 = vand.u32 2147483647, %v248
    %v256 = vand.u32 %v255, 8388607
    %v257 = vor.u32 %v256, 8388608
    %v258 = vsub.s32 0, %v257
    %v259 = vadd.s32 %v254, 1
    %vm260 = vcmp.gt.s32.totalorder %v259, 0
    %v261 = vsel %vm260, %v259, 0
    %v262 = vshrl.u32 %v261, 5
    %v263 = vand.u32 %v261, 31
    %v264 = vsub.s32 32, %v263
    %v265 = vshrl.u32 683565275, %v264
    %v266 = vshll.u32 683565275, %v263
    %v267 = vshrl.u32 2475754826, %v264
    %v268 = vor.u32 %v266, %v267
    %v269 = vshll.u32 2475754826, %v263
    %v270 = vshrl.u32 2131351028, %v264
    %v271 = vor.u32 %v269, %v270
    %v272 = vshll.u32 2131351028, %v263
    %v273 = vshrl.u32 2102212464, %v264
    %v274 = vor.u32 %v272, %v273
    %v275 = vshll.u32 2102212464, %v263
    %v276 = vshrl.u32 920167782, %v264
    %v277 = vor.u32 %v275, %v276
    %v278 = vshll.u32 920167782, %v263
    %v279 = vshrl.u32 1326507024, %v264
    %v280 = vor.u32 %v278, %v279
    %vm281 = vcmp.lt.s32.totalorder %v262, 1
    %vm282 = vcmp.lt.s32.totalorder %v262, 2
    %vm283 = vcmp.lt.s32.totalorder %v262, 3
    %vm284 = vcmp.lt.s32.totalorder %v262, 4
    %v285 = vsel %vm281, %v265, %v268
    %v286 = vsel %vm284, %v274, 2102212464
    %v287 = vsel %vm283, %v271, %v286
    %v288 = vsel %vm282, %v285, %v287
    %v289 = vsel %vm281, %v268, %v271
    %v290 = vsel %vm284, %v277, 920167782
    %v291 = vsel %vm283, %v274, %v290
    %v292 = vsel %vm282, %v289, %v291
    %v293 = vsel %vm281, %v271, %v274
    %v294 = vsel %vm284, %v280, 1326507024
    %v295 = vsel %vm283, %v277, %v294
    %v296 = vsel %vm282, %v293, %v295
    %v297 = vshll.u32 %v257, 8
    %v298 = vmul.u32.u64.compose %v297, %v296
    %v299 = vextract.low.u32 %v298
    %v300 = vextract.high.u32 %v298
    %v301 = vmul.u32.u64.compose %v297, %v292
    %v302 = vextract.low.u32 %v301
    %v303 = vextract.high.u32 %v301
    %v304 = vmul.u32 %v297, %v288
    %v305 = vadd.s32 %v300, %v302
    %vm306 = vc.u32 %v300, %v302
    %v307 = vadd.s32 %v303, 1
    %v308 = vsel %vm306, %v307, %v303
    %v309 = vadd.s32 %v304, %v308
    %v310 = vadd.s32 %v309, 536870912
    %v311 = vshrl.u32 %v310, 30
    %v312 = vshll.u32 %v311, 30
    %v313 = vsub.s32 %v309, %v312
    %vm314 = vcmp.lt.s32.totalorder %v313, 0
    %v315 = vsub.s32 0, %v313
    %v316 = vsel %vm314, %v315, %v313
    %v317 = vclz %v316
    %v318 = vsub.s32 %v317, 2
    %vm319 = vcmp.gt.s32.totalorder 0, %v318
    %v320 = vsel %vm319, 0, %v318
    %v321 = vsub.s32 32, %v320
    %v322 = vshll.u32 %v313, %v320
    %v323 = vshrl.u32 %v305, %v321
    %v324 = vor.u32 %v322, %v323
    %v325 = vsub.s32 4294967266, %v320
    %v326 = vadd.s32 %v325, 127
    %v327 = vshll.u32 %v326, 23
    %v328 = vor.u32 4788187, %v327
    %v329 = vand.u32 2147483647, %v328
    %v331 = vcvt.s32.f32 %v324
    %v332 = vmul.f32 %v331, %v329
    %v333 = vxor.u32 %v332, 2147483648
    %v334 = vsel %vm251, %v333, %v332
    %v335 = vsub.s32 4, %v311
    %v336 = vsel %vm251, %v335, %v311
    %v337 = vsel %vm250, %v248, %v334
    %v338 = vsel %vm250, 0, %v336
    %v339 = vcosq.f32.pop %v337
    %v340 = vsinq.f32.pop %v337
    %vm341 = vweird.f32 %v248
    %v342 = vand.u32 %v338, 3
    %vm343 = vcmp.lt.s32.totalorder %v342, 2
    %vm344 = vcmp.eq.s32.totalorder %v342, 0
    %v345 = vxor.u32 %v340, 2147483648
    %v346 = vsel %vm344, %v339, %v345
    %vm347 = vcmp.eq.s32.totalorder %v342, 2
    %v348 = vxor.u32 %v339, 2147483648
    %v349 = vsel %vm347, %v348, %v340
    %v350 = vsel %vm343, %v346, %v349
    %v351 = vsel %vm341, nan, %v350
    %v352 = vmul.f32 %v247, %v351
    %v353 = vpack.c.bf16 %v352, %v352
    %v354 = vld [vmem:[#allocation2 + $0x40] sm:$0xf]
    %v355 = vld [vmem:[#allocation2 + $0x44] sm:$0xf]
    %v356 = vld [vmem:[#allocation2 + $0x48] sm:$0xf]
    %v357 = vld [vmem:[#allocation2 + $0x4c] sm:$0xf]
    %v358 = vld [vmem:[#allocation2 + $0x50] sm:$0xf]
    %v359 = vld [vmem:[#allocation2 + $0x54] sm:$0xf]
    %v360 = vld [vmem:[#allocation2 + $0x58] sm:$0xf]
    %v361 = vld [vmem:[#allocation2 + $0x5c] sm:$0xf]
    %v362 = vld [vmem:[#allocation2 + $0x60] sm:$0xf]
    %v363 = vld [vmem:[#allocation2 + $0x64] sm:$0xf]
    %v364 = vld [vmem:[#allocation2 + $0x68] sm:$0xf]
    %v365 = vld [vmem:[#allocation2 + $0x6c] sm:$0xf]
    %v366 = vld [vmem:[#allocation2 + $0x70] sm:$0xf]
    %v367 = vld [vmem:[#allocation2 + $0x74] sm:$0xf]
    %v368 = vld [vmem:[#allocation2 + $0x78] sm:$0xf]
    %v369 = vld [vmem:[#allocation2 + $0x7c] sm:$0xf]
    %v386 = vunpack.c.l.b16 %v354
    %v387 = vunpack.c.l.b16 %v355
    %v388 = vunpack.c.l.b16 %v356
    %v389 = vunpack.c.l.b16 %v357
    %v390 = vunpack.c.l.b16 %v358
    %v391 = vunpack.c.l.b16 %v359
    %v392 = vunpack.c.l.b16 %v360
    %v393 = vunpack.c.l.b16 %v361
    %v394 = vunpack.c.l.b16 %v362
    %v395 = vunpack.c.l.b16 %v363
    %v396 = vunpack.c.l.b16 %v364
    %v397 = vunpack.c.l.b16 %v365
    %v398 = vunpack.c.l.b16 %v366
    %v399 = vunpack.c.l.b16 %v367
    %v400 = vunpack.c.l.b16 %v368
    %v401 = vunpack.c.l.b16 %v369
    %v402 = vpack.c.b16 %v387, %v386
    %v403 = vpack.c.b16 %v389, %v388
    %v404 = vpack.c.b16 %v391, %v390
    %v405 = vpack.c.b16 %v393, %v392
    %v406 = vpack.c.b16 %v395, %v394
    %v407 = vpack.c.b16 %v397, %v396
    %v408 = vpack.c.b16 %v399, %v398
    %v409 = vpack.c.b16 %v401, %v400
    %418 = vmatprep.subr.bf16.mxu0 0
    %419 = vmatpush1.bf16.msra.mxu0 %v402
    %420 = vmatprep.subr.bf16.mxu0 0
    %421 = vmatpush1.bf16.msra.mxu0 %v403
    %422 = vmatprep.subr.bf16.mxu0 0
    %423 = vmatpush1.bf16.msra.mxu0 %v404
    %424 = vmatprep.subr.bf16.mxu0 0
    %425 = vmatpush1.bf16.msra.mxu0 %v405
    %426 = vmatprep.subr.bf16.mxu0 0
    %427 = vmatpush1.bf16.msra.mxu0 %v406
    %428 = vmatprep.subr.bf16.mxu0 0
    %429 = vmatpush1.bf16.msra.mxu0 %v407
    %430 = vmatprep.subr.bf16.mxu0 0
    %431 = vmatpush1.bf16.msra.mxu0 %v408
    %432 = vmatprep.subr.bf16.mxu0 0
    %433 = vmatpush1.bf16.msra.mxu0 %v409
    %434 = vmatprep.subr.bf16.mxu0 0
    %435 = vmatpush1.bf16.msra.mxu0 0
    %436 = vmatprep.subr.bf16.mxu0 0
    %437 = vmatpush1.bf16.msra.mxu0 0
    %438 = vmatprep.subr.bf16.mxu0 0
    %439 = vmatpush1.bf16.msra.mxu0 0
    %440 = vmatprep.subr.bf16.mxu0 0
    %441 = vmatpush1.bf16.msra.mxu0 0
    %442 = vmatprep.subr.bf16.mxu0 0
    %443 = vmatpush1.bf16.msra.mxu0 0
    %444 = vmatprep.subr.bf16.mxu0 0
    %445 = vmatpush1.bf16.msra.mxu0 0
    %446 = vmatprep.subr.bf16.mxu0 0
    %447 = vmatpush1.bf16.msra.mxu0 0
    %448 = vmatprep.subr.bf16.mxu0 0
    %449 = vmatpush1.bf16.msra.mxu0 0
    %450 = vmatprep.mubr.bf16.mxu0 0
    %451 = vmatmul.mubr.bf16.gmra.mrb[0].mxu0 %v353
    %v452 = vpop.f32.mrb[0].mxu0
    %v453 = vadd.f32 0.0, %v452
    %v454 = vpop.f32.mrb[0].mxu0
    %v455 = vpop.f32.mrb[0].mxu0
    %v456 = vpop.f32.mrb[0].mxu0
    %457 = vdwg.mxu0
    %v474 = vunpack.c.l.b16 %v186
    %v475 = vunpack.c.l.b16 %v187
    %v476 = vunpack.c.l.b16 %v188
    %v477 = vunpack.c.l.b16 %v189
    %v478 = vunpack.c.l.b16 %v190
    %v479 = vunpack.c.l.b16 %v191
    %v480 = vunpack.c.l.b16 %v192
    %v481 = vunpack.c.l.b16 %v193
    %v482 = vunpack.c.l.b16 %v194
    %v483 = vunpack.c.l.b16 %v195
    %v484 = vunpack.c.l.b16 %v196
    %v485 = vunpack.c.l.b16 %v197
    %v486 = vunpack.c.l.b16 %v198
    %v487 = vunpack.c.l.b16 %v199
    %v488 = vunpack.c.l.b16 %v200
    %v489 = vunpack.c.l.b16 %v201
    %v490 = vpack.c.b16 %v475, %v474
    %v491 = vpack.c.b16 %v477, %v476
    %v492 = vpack.c.b16 %v479, %v478
    %v493 = vpack.c.b16 %v481, %v480
    %v494 = vpack.c.b16 %v483, %v482
    %v495 = vpack.c.b16 %v485, %v484
    %v496 = vpack.c.b16 %v487, %v486
    %v497 = vpack.c.b16 %v489, %v488
    %506 = vmatprep.subr.bf16.mxu0 0
    %507 = vmatpush1.bf16.msra.mxu0 %v490
    %508 = vmatprep.subr.bf16.mxu0 0
    %509 = vmatpush1.bf16.msra.mxu0 %v491
    %510 = vmatprep.subr.bf16.mxu0 0
    %511 = vmatpush1.bf16.msra.mxu0 %v492
    %512 = vmatprep.subr.bf16.mxu0 0
    %513 = vmatpush1.bf16.msra.mxu0 %v493
    %514 = vmatprep.subr.bf16.mxu0 0
    %515 = vmatpush1.bf16.msra.mxu0 %v494
    %516 = vmatprep.subr.bf16.mxu0 0
    %517 = vmatpush1.bf16.msra.mxu0 %v495
    %518 = vmatprep.subr.bf16.mxu0 0
    %519 = vmatpush1.bf16.msra.mxu0 %v496
    %520 = vmatprep.subr.bf16.mxu0 0
    %521 = vmatpush1.bf16.msra.mxu0 %v497
    %522 = vmatprep.subr.bf16.mxu0 0
    %523 = vmatpush1.bf16.msra.mxu0 0
    %524 = vmatprep.subr.bf16.mxu0 0
    %525 = vmatpush1.bf16.msra.mxu0 0
    %526 = vmatprep.subr.bf16.mxu0 0
    %527 = vmatpush1.bf16.msra.mxu0 0
    %528 = vmatprep.subr.bf16.mxu0 0
    %529 = vmatpush1.bf16.msra.mxu0 0
    %530 = vmatprep.subr.bf16.mxu0 0
    %531 = vmatpush1.bf16.msra.mxu0 0
    %532 = vmatprep.subr.bf16.mxu0 0
    %533 = vmatpush1.bf16.msra.mxu0 0
    %534 = vmatprep.subr.bf16.mxu0 0
    %535 = vmatpush1.bf16.msra.mxu0 0
    %536 = vmatprep.subr.bf16.mxu0 0
    %537 = vmatpush1.bf16.msra.mxu0 0
    %538 = vmatprep.mubr.bf16.mxu0 0
    %539 = vmatmul.mubr.bf16.gmra.mrb[0].mxu0 %v185
    %v540 = vpop.f32.mrb[0].mxu0
    %v541 = vadd.f32 %v453, %v540
    %v542 = vpop.f32.mrb[0].mxu0
    %v543 = vpop.f32.mrb[0].mxu0
    %v544 = vpop.f32.mrb[0].mxu0
    %545 = vdwg.mxu0
    %v546 = vadd.s32 %v33, 256
    %v547 = vadd.s32 %v34, %v546
    %v548 = vmul.u32 %v547, 2654435769
    %v549 = vadd.s32 %v548, 2325067718
    %v550 = vxor.u32 %v549, 1759714724
    %v551 = vshra.s32 %v550, 16
    %v552 = vand.u32 %v551, 65535
    %v553 = vxor.u32 %v550, %v552
    %v554 = vmul.u32 %v553, 2146121005
    %v555 = vshra.s32 %v554, 15
    %v556 = vand.u32 %v555, 131071
    %v557 = vxor.u32 %v554, %v556
    %v558 = vmul.u32 %v557, 2221713035
    %v559 = vshra.s32 %v558, 16
    %v560 = vand.u32 %v559, 65535
    %v561 = vxor.u32 %v558, %v560
    %v562 = vand.u32 %v561, 8388607
    %v563 = vcvt.s32.f32 %v562
    %v564 = vmul.f32 %v563, 1.1920929e-07
    %v565 = vadd.f32 %v564, 5.9604645e-08
    %v566 = vxor.u32 %v549, 3039394381
    %v567 = vshra.s32 %v566, 16
    %v568 = vand.u32 %v567, 65535
    %v569 = vxor.u32 %v566, %v568
    %v570 = vmul.u32 %v569, 2146121005
    %v571 = vshra.s32 %v570, 15
    %v572 = vand.u32 %v571, 131071
    %v573 = vxor.u32 %v570, %v572
    %v574 = vmul.u32 %v573, 2221713035
    %v575 = vshra.s32 %v574, 16
    %v576 = vand.u32 %v575, 65535
    %v577 = vxor.u32 %v574, %v576
    %v578 = vand.u32 %v577, 8388607
    %v579 = vcvt.s32.f32 %v578
    %v580 = vmul.f32 %v579, 1.1920929e-07
    %v581 = vadd.f32 %v580, 5.9604645e-08
    %v582 = vlog2.pop %v565
    %v583 = vmul.f32 %v582, 0.6931472
    %v584 = vmul.f32 %v583, -2.0
    %v585 = vrsqrt.pop %v584
    %v586 = vmul.f32 %v584, %v585
    %vm587 = vcmp.eq.f32.partialorder %v584, inf
    %v588 = vsel %vm587, %v584, %v586
    %vm589 = vcmp.eq.f32.partialorder %v584, 0.0
    %v590 = vand.u32 %v584, 2147483648
    %v591 = vsel %vm589, %v590, %v588
    %v592 = vmul.f32 %v581, 6.2831855
    %v593 = vand.u32 2147483647, %v592
    %vm594 = vcmp.le.f32.partialorder %v593, 0.7853982
    %vm595 = vcmp.lt.s32.totalorder %v592, 0
    %v596 = vand.u32 %v592, 2139095040
    %v597 = vshrl.u32 %v596, 23
    %v598 = vsub.s32 %v597, 127
    %v599 = vand.u32 2147483647, %v592
    %v600 = vand.u32 %v599, 8388607
    %v601 = vor.u32 %v600, 8388608
    %v602 = vsub.s32 0, %v601
    %v603 = vadd.s32 %v598, 1
    %vm604 = vcmp.gt.s32.totalorder %v603, 0
    %v605 = vsel %vm604, %v603, 0
    %v606 = vshrl.u32 %v605, 5
    %v607 = vand.u32 %v605, 31
    %v608 = vsub.s32 32, %v607
    %v609 = vshrl.u32 683565275, %v608
    %v610 = vshll.u32 683565275, %v607
    %v611 = vshrl.u32 2475754826, %v608
    %v612 = vor.u32 %v610, %v611
    %v613 = vshll.u32 2475754826, %v607
    %v614 = vshrl.u32 2131351028, %v608
    %v615 = vor.u32 %v613, %v614
    %v616 = vshll.u32 2131351028, %v607
    %v617 = vshrl.u32 2102212464, %v608
    %v618 = vor.u32 %v616, %v617
    %v619 = vshll.u32 2102212464, %v607
    %v620 = vshrl.u32 920167782, %v608
    %v621 = vor.u32 %v619, %v620
    %v622 = vshll.u32 920167782, %v607
    %v623 = vshrl.u32 1326507024, %v608
    %v624 = vor.u32 %v622, %v623
    %vm625 = vcmp.lt.s32.totalorder %v606, 1
    %vm626 = vcmp.lt.s32.totalorder %v606, 2
    %vm627 = vcmp.lt.s32.totalorder %v606, 3
    %vm628 = vcmp.lt.s32.totalorder %v606, 4
    %v629 = vsel %vm625, %v609, %v612
    %v630 = vsel %vm628, %v618, 2102212464
    %v631 = vsel %vm627, %v615, %v630
    %v632 = vsel %vm626, %v629, %v631
    %v633 = vsel %vm625, %v612, %v615
    %v634 = vsel %vm628, %v621, 920167782
    %v635 = vsel %vm627, %v618, %v634
    %v636 = vsel %vm626, %v633, %v635
    %v637 = vsel %vm625, %v615, %v618
    %v638 = vsel %vm628, %v624, 1326507024
    %v639 = vsel %vm627, %v621, %v638
    %v640 = vsel %vm626, %v637, %v639
    %v641 = vshll.u32 %v601, 8
    %v642 = vmul.u32.u64.compose %v641, %v640
    %v643 = vextract.low.u32 %v642
    %v644 = vextract.high.u32 %v642
    %v645 = vmul.u32.u64.compose %v641, %v636
    %v646 = vextract.low.u32 %v645
    %v647 = vextract.high.u32 %v645
    %v648 = vmul.u32 %v641, %v632
    %v649 = vadd.s32 %v644, %v646
    %vm650 = vc.u32 %v644, %v646
    %v651 = vadd.s32 %v647, 1
    %v652 = vsel %vm650, %v651, %v647
    %v653 = vadd.s32 %v648, %v652
    %v654 = vadd.s32 %v653, 536870912
    %v655 = vshrl.u32 %v654, 30
    %v656 = vshll.u32 %v655, 30
    %v657 = vsub.s32 %v653, %v656
    %vm658 = vcmp.lt.s32.totalorder %v657, 0
    %v659 = vsub.s32 0, %v657
    %v660 = vsel %vm658, %v659, %v657
    %v661 = vclz %v660
    %v662 = vsub.s32 %v661, 2
    %vm663 = vcmp.gt.s32.totalorder 0, %v662
    %v664 = vsel %vm663, 0, %v662
    %v665 = vsub.s32 32, %v664
    %v666 = vshll.u32 %v657, %v664
    %v667 = vshrl.u32 %v649, %v665
    %v668 = vor.u32 %v666, %v667
    %v669 = vsub.s32 4294967266, %v664
    %v670 = vadd.s32 %v669, 127
    %v671 = vshll.u32 %v670, 23
    %v672 = vor.u32 4788187, %v671
    %v673 = vand.u32 2147483647, %v672
    %v675 = vcvt.s32.f32 %v668
    %v676 = vmul.f32 %v675, %v673
    %v677 = vxor.u32 %v676, 2147483648
    %v678 = vsel %vm595, %v677, %v676
    %v679 = vsub.s32 4, %v655
    %v680 = vsel %vm595, %v679, %v655
    %v681 = vsel %vm594, %v592, %v678
    %v682 = vsel %vm594, 0, %v680
    %v683 = vcosq.f32.pop %v681
    %v684 = vsinq.f32.pop %v681
    %vm685 = vweird.f32 %v592
    %v686 = vand.u32 %v682, 3
    %vm687 = vcmp.lt.s32.totalorder %v686, 2
    %vm688 = vcmp.eq.s32.totalorder %v686, 0
    %v689 = vxor.u32 %v684, 2147483648
    %v690 = vsel %vm688, %v683, %v689
    %vm691 = vcmp.eq.s32.totalorder %v686, 2
    %v692 = vxor.u32 %v683, 2147483648
    %v693 = vsel %vm691, %v692, %v684
    %v694 = vsel %vm687, %v690, %v693
    %v695 = vsel %vm685, nan, %v694
    %v696 = vmul.f32 %v591, %v695
    %v697 = vpack.c.bf16 %v696, %v696
    %v698 = vld [vmem:[#allocation2 + $0x80] sm:$0xf]
    %v699 = vld [vmem:[#allocation2 + $0x84] sm:$0xf]
    %v700 = vld [vmem:[#allocation2 + $0x88] sm:$0xf]
    %v701 = vld [vmem:[#allocation2 + $0x8c] sm:$0xf]
    %v702 = vld [vmem:[#allocation2 + $0x90] sm:$0xf]
    %v703 = vld [vmem:[#allocation2 + $0x94] sm:$0xf]
    %v704 = vld [vmem:[#allocation2 + $0x98] sm:$0xf]
    %v705 = vld [vmem:[#allocation2 + $0x9c] sm:$0xf]
    %v706 = vld [vmem:[#allocation2 + $0xa0] sm:$0xf]
    %v707 = vld [vmem:[#allocation2 + $0xa4] sm:$0xf]
    %v708 = vld [vmem:[#allocation2 + $0xa8] sm:$0xf]
    %v709 = vld [vmem:[#allocation2 + $0xac] sm:$0xf]
    %v710 = vld [vmem:[#allocation2 + $0xb0] sm:$0xf]
    %v711 = vld [vmem:[#allocation2 + $0xb4] sm:$0xf]
    %v712 = vld [vmem:[#allocation2 + $0xb8] sm:$0xf]
    %v713 = vld [vmem:[#allocation2 + $0xbc] sm:$0xf]
    %v730 = vunpack.c.l.b16 %v698
    %v731 = vunpack.c.l.b16 %v699
    %v732 = vunpack.c.l.b16 %v700
    %v733 = vunpack.c.l.b16 %v701
    %v734 = vunpack.c.l.b16 %v702
    %v735 = vunpack.c.l.b16 %v703
    %v736 = vunpack.c.l.b16 %v704
    %v737 = vunpack.c.l.b16 %v705
    %v738 = vunpack.c.l.b16 %v706
    %v739 = vunpack.c.l.b16 %v707
    %v740 = vunpack.c.l.b16 %v708
    %v741 = vunpack.c.l.b16 %v709
    %v742 = vunpack.c.l.b16 %v710
    %v743 = vunpack.c.l.b16 %v711
    %v744 = vunpack.c.l.b16 %v712
    %v745 = vunpack.c.l.b16 %v713
    %v746 = vpack.c.b16 %v731, %v730
    %v747 = vpack.c.b16 %v733, %v732
    %v748 = vpack.c.b16 %v735, %v734
    %v749 = vpack.c.b16 %v737, %v736
    %v750 = vpack.c.b16 %v739, %v738
    %v751 = vpack.c.b16 %v741, %v740
    %v752 = vpack.c.b16 %v743, %v742
    %v753 = vpack.c.b16 %v745, %v744
    %762 = vmatprep.subr.bf16.mxu0 0
    %763 = vmatpush1.bf16.msra.mxu0 %v746
    %764 = vmatprep.subr.bf16.mxu0 0
    %765 = vmatpush1.bf16.msra.mxu0 %v747
    %766 = vmatprep.subr.bf16.mxu0 0
    %767 = vmatpush1.bf16.msra.mxu0 %v748
    %768 = vmatprep.subr.bf16.mxu0 0
    %769 = vmatpush1.bf16.msra.mxu0 %v749
    %770 = vmatprep.subr.bf16.mxu0 0
    %771 = vmatpush1.bf16.msra.mxu0 %v750
    %772 = vmatprep.subr.bf16.mxu0 0
    %773 = vmatpush1.bf16.msra.mxu0 %v751
    %774 = vmatprep.subr.bf16.mxu0 0
    %775 = vmatpush1.bf16.msra.mxu0 %v752
    %776 = vmatprep.subr.bf16.mxu0 0
    %777 = vmatpush1.bf16.msra.mxu0 %v753
    %778 = vmatprep.subr.bf16.mxu0 0
    %779 = vmatpush1.bf16.msra.mxu0 0
    %780 = vmatprep.subr.bf16.mxu0 0
    %781 = vmatpush1.bf16.msra.mxu0 0
    %782 = vmatprep.subr.bf16.mxu0 0
    %783 = vmatpush1.bf16.msra.mxu0 0
    %784 = vmatprep.subr.bf16.mxu0 0
    %785 = vmatpush1.bf16.msra.mxu0 0
    %786 = vmatprep.subr.bf16.mxu0 0
    %787 = vmatpush1.bf16.msra.mxu0 0
    %788 = vmatprep.subr.bf16.mxu0 0
    %789 = vmatpush1.bf16.msra.mxu0 0
    %790 = vmatprep.subr.bf16.mxu0 0
    %791 = vmatpush1.bf16.msra.mxu0 0
    %792 = vmatprep.subr.bf16.mxu0 0
    %793 = vmatpush1.bf16.msra.mxu0 0
    %794 = vmatprep.mubr.bf16.mxu0 0
    %795 = vmatmul.mubr.bf16.gmra.mrb[0].mxu0 %v697
    %v796 = vpop.f32.mrb[0].mxu0
    %v797 = vadd.f32 0.0, %v796
    %v798 = vpop.f32.mrb[0].mxu0
    %v799 = vpop.f32.mrb[0].mxu0
    %v800 = vpop.f32.mrb[0].mxu0
    %801 = vdwg.mxu0
    %v802 = vadd.f32 %v541, %v797
    %v803 = vadd.s32 %v33, 384
    %v804 = vadd.s32 %v34, %v803
    %v805 = vmul.u32 %v804, 2654435769
    %v806 = vadd.s32 %v805, 2325067718
    %v807 = vxor.u32 %v806, 1759714724
    %v808 = vshra.s32 %v807, 16
    %v809 = vand.u32 %v808, 65535
    %v810 = vxor.u32 %v807, %v809
    %v811 = vmul.u32 %v810, 2146121005
    %v812 = vshra.s32 %v811, 15
    %v813 = vand.u32 %v812, 131071
    %v814 = vxor.u32 %v811, %v813
    %v815 = vmul.u32 %v814, 2221713035
    %v816 = vshra.s32 %v815, 16
    %v817 = vand.u32 %v816, 65535
    %v818 = vxor.u32 %v815, %v817
    %v819 = vand.u32 %v818, 8388607
    %v820 = vcvt.s32.f32 %v819
    %v821 = vmul.f32 %v820, 1.1920929e-07
    %v822 = vadd.f32 %v821, 5.9604645e-08
    %v823 = vxor.u32 %v806, 3039394381
    %v824 = vshra.s32 %v823, 16
    %v825 = vand.u32 %v824, 65535
    %v826 = vxor.u32 %v823, %v825
    %v827 = vmul.u32 %v826, 2146121005
    %v828 = vshra.s32 %v827, 15
    %v829 = vand.u32 %v828, 131071
    %v830 = vxor.u32 %v827, %v829
    %v831 = vmul.u32 %v830, 2221713035
    %v832 = vshra.s32 %v831, 16
    %v833 = vand.u32 %v832, 65535
    %v834 = vxor.u32 %v831, %v833
    %v835 = vand.u32 %v834, 8388607
    %v836 = vcvt.s32.f32 %v835
    %v837 = vmul.f32 %v836, 1.1920929e-07
    %v838 = vadd.f32 %v837, 5.9604645e-08
    %v839 = vlog2.pop %v822
    %v840 = vmul.f32 %v839, 0.6931472
    %v841 = vmul.f32 %v840, -2.0
    %v842 = vrsqrt.pop %v841
    %v843 = vmul.f32 %v841, %v842
    %vm844 = vcmp.eq.f32.partialorder %v841, inf
    %v845 = vsel %vm844, %v841, %v843
    %vm846 = vcmp.eq.f32.partialorder %v841, 0.0
    %v847 = vand.u32 %v841, 2147483648
    %v848 = vsel %vm846, %v847, %v845
    %v849 = vmul.f32 %v838, 6.2831855
    %v850 = vand.u32 2147483647, %v849
    %vm851 = vcmp.le.f32.partialorder %v850, 0.7853982
    %vm852 = vcmp.lt.s32.totalorder %v849, 0
    %v853 = vand.u32 %v849, 2139095040
    %v854 = vshrl.u32 %v853, 23
    %v855 = vsub.s32 %v854, 127
    %v856 = vand.u32 2147483647, %v849
    %v857 = vand.u32 %v856, 8388607
    %v858 = vor.u32 %v857, 8388608
    %v859 = vsub.s32 0, %v858
    %v860 = vadd.s32 %v855, 1
    %vm861 = vcmp.gt.s32.totalorder %v860, 0
    %v862 = vsel %vm861, %v860, 0
    %v863 = vshrl.u32 %v862, 5
    %v864 = vand.u32 %v862, 31
    %v865 = vsub.s32 32, %v864
    %v866 = vshrl.u32 683565275, %v865
    %v867 = vshll.u32 683565275, %v864
    %v868 = vshrl.u32 2475754826, %v865
    %v869 = vor.u32 %v867, %v868
    %v870 = vshll.u32 2475754826, %v864
    %v871 = vshrl.u32 2131351028, %v865
    %v872 = vor.u32 %v870, %v871
    %v873 = vshll.u32 2131351028, %v864
    %v874 = vshrl.u32 2102212464, %v865
    %v875 = vor.u32 %v873, %v874
    %v876 = vshll.u32 2102212464, %v864
    %v877 = vshrl.u32 920167782, %v865
    %v878 = vor.u32 %v876, %v877
    %v879 = vshll.u32 920167782, %v864
    %v880 = vshrl.u32 1326507024, %v865
    %v881 = vor.u32 %v879, %v880
    %vm882 = vcmp.lt.s32.totalorder %v863, 1
    %vm883 = vcmp.lt.s32.totalorder %v863, 2
    %vm884 = vcmp.lt.s32.totalorder %v863, 3
    %vm885 = vcmp.lt.s32.totalorder %v863, 4
    %v886 = vsel %vm882, %v866, %v869
    %v887 = vsel %vm885, %v875, 2102212464
    %v888 = vsel %vm884, %v872, %v887
    %v889 = vsel %vm883, %v886, %v888
    %v890 = vsel %vm882, %v869, %v872
    %v891 = vsel %vm885, %v878, 920167782
    %v892 = vsel %vm884, %v875, %v891
    %v893 = vsel %vm883, %v890, %v892
    %v894 = vsel %vm882, %v872, %v875
    %v895 = vsel %vm885, %v881, 1326507024
    %v896 = vsel %vm884, %v878, %v895
    %v897 = vsel %vm883, %v894, %v896
    %v898 = vshll.u32 %v858, 8
    %v899 = vmul.u32.u64.compose %v898, %v897
    %v900 = vextract.low.u32 %v899
    %v901 = vextract.high.u32 %v899
    %v902 = vmul.u32.u64.compose %v898, %v893
    %v903 = vextract.low.u32 %v902
    %v904 = vextract.high.u32 %v902
    %v905 = vmul.u32 %v898, %v889
    %v906 = vadd.s32 %v901, %v903
    %vm907 = vc.u32 %v901, %v903
    %v908 = vadd.s32 %v904, 1
    %v909 = vsel %vm907, %v908, %v904
    %v910 = vadd.s32 %v905, %v909
    %v911 = vadd.s32 %v910, 536870912
    %v912 = vshrl.u32 %v911, 30
    %v913 = vshll.u32 %v912, 30
    %v914 = vsub.s32 %v910, %v913
    %vm915 = vcmp.lt.s32.totalorder %v914, 0
    %v916 = vsub.s32 0, %v914
    %v917 = vsel %vm915, %v916, %v914
    %v918 = vclz %v917
    %v919 = vsub.s32 %v918, 2
    %vm920 = vcmp.gt.s32.totalorder 0, %v919
    %v921 = vsel %vm920, 0, %v919
    %v922 = vsub.s32 32, %v921
    %v923 = vshll.u32 %v914, %v921
    %v924 = vshrl.u32 %v906, %v922
    %v925 = vor.u32 %v923, %v924
    %v926 = vsub.s32 4294967266, %v921
    %v927 = vadd.s32 %v926, 127
    %v928 = vshll.u32 %v927, 23
    %v929 = vor.u32 4788187, %v928
    %v930 = vand.u32 2147483647, %v929
    %v932 = vcvt.s32.f32 %v925
    %v933 = vmul.f32 %v932, %v930
    %v934 = vxor.u32 %v933, 2147483648
    %v935 = vsel %vm852, %v934, %v933
    %v936 = vsub.s32 4, %v912
    %v937 = vsel %vm852, %v936, %v912
    %v938 = vsel %vm851, %v849, %v935
    %v939 = vsel %vm851, 0, %v937
    %v940 = vcosq.f32.pop %v938
    %v941 = vsinq.f32.pop %v938
    %vm942 = vweird.f32 %v849
    %v943 = vand.u32 %v939, 3
    %vm944 = vcmp.lt.s32.totalorder %v943, 2
    %vm945 = vcmp.eq.s32.totalorder %v943, 0
    %v946 = vxor.u32 %v941, 2147483648
    %v947 = vsel %vm945, %v940, %v946
    %vm948 = vcmp.eq.s32.totalorder %v943, 2
    %v949 = vxor.u32 %v940, 2147483648
    %v950 = vsel %vm948, %v949, %v941
    %v951 = vsel %vm944, %v947, %v950
    %v952 = vsel %vm942, nan, %v951
    %v953 = vmul.f32 %v848, %v952
    %v954 = vpack.c.bf16 %v953, %v953
    %v955 = vld [vmem:[#allocation2 + $0xc0] sm:$0xf]
    %v956 = vld [vmem:[#allocation2 + $0xc4] sm:$0xf]
    %v957 = vld [vmem:[#allocation2 + $0xc8] sm:$0xf]
    %v958 = vld [vmem:[#allocation2 + $0xcc] sm:$0xf]
    %v959 = vld [vmem:[#allocation2 + $0xd0] sm:$0xf]
    %v960 = vld [vmem:[#allocation2 + $0xd4] sm:$0xf]
    %v961 = vld [vmem:[#allocation2 + $0xd8] sm:$0xf]
    %v962 = vld [vmem:[#allocation2 + $0xdc] sm:$0xf]
    %v963 = vld [vmem:[#allocation2 + $0xe0] sm:$0xf]
    %v964 = vld [vmem:[#allocation2 + $0xe4] sm:$0xf]
    %v965 = vld [vmem:[#allocation2 + $0xe8] sm:$0xf]
    %v966 = vld [vmem:[#allocation2 + $0xec] sm:$0xf]
    %v967 = vld [vmem:[#allocation2 + $0xf0] sm:$0xf]
    %v968 = vld [vmem:[#allocation2 + $0xf4] sm:$0xf]
    %v969 = vld [vmem:[#allocation2 + $0xf8] sm:$0xf]
    %v970 = vld [vmem:[#allocation2 + $0xfc] sm:$0xf]
    %v987 = vunpack.c.l.b16 %v955
    %v988 = vunpack.c.l.b16 %v956
    %v989 = vunpack.c.l.b16 %v957
    %v990 = vunpack.c.l.b16 %v958
    %v991 = vunpack.c.l.b16 %v959
    %v992 = vunpack.c.l.b16 %v960
    %v993 = vunpack.c.l.b16 %v961
    %v994 = vunpack.c.l.b16 %v962
    %v995 = vunpack.c.l.b16 %v963
    %v996 = vunpack.c.l.b16 %v964
    %v997 = vunpack.c.l.b16 %v965
    %v998 = vunpack.c.l.b16 %v966
    %v999 = vunpack.c.l.b16 %v967
    %v1000 = vunpack.c.l.b16 %v968
    %v1001 = vunpack.c.l.b16 %v969
    %v1002 = vunpack.c.l.b16 %v970
    %v1003 = vpack.c.b16 %v988, %v987
    %v1004 = vpack.c.b16 %v990, %v989
    %v1005 = vpack.c.b16 %v992, %v991
    %v1006 = vpack.c.b16 %v994, %v993
    %v1007 = vpack.c.b16 %v996, %v995
    %v1008 = vpack.c.b16 %v998, %v997
    %v1009 = vpack.c.b16 %v1000, %v999
    %v1010 = vpack.c.b16 %v1002, %v1001
    %1019 = vmatprep.subr.bf16.mxu0 0
    %1020 = vmatpush1.bf16.msra.mxu0 %v1003
    %1021 = vmatprep.subr.bf16.mxu0 0
    %1022 = vmatpush1.bf16.msra.mxu0 %v1004
    %1023 = vmatprep.subr.bf16.mxu0 0
    %1024 = vmatpush1.bf16.msra.mxu0 %v1005
    %1025 = vmatprep.subr.bf16.mxu0 0
    %1026 = vmatpush1.bf16.msra.mxu0 %v1006
    %1027 = vmatprep.subr.bf16.mxu0 0
    %1028 = vmatpush1.bf16.msra.mxu0 %v1007
    %1029 = vmatprep.subr.bf16.mxu0 0
    %1030 = vmatpush1.bf16.msra.mxu0 %v1008
    %1031 = vmatprep.subr.bf16.mxu0 0
    %1032 = vmatpush1.bf16.msra.mxu0 %v1009
    %1033 = vmatprep.subr.bf16.mxu0 0
    %1034 = vmatpush1.bf16.msra.mxu0 %v1010
    %1035 = vmatprep.subr.bf16.mxu0 0
    %1036 = vmatpush1.bf16.msra.mxu0 0
    %1037 = vmatprep.subr.bf16.mxu0 0
    %1038 = vmatpush1.bf16.msra.mxu0 0
    %1039 = vmatprep.subr.bf16.mxu0 0
    %1040 = vmatpush1.bf16.msra.mxu0 0
    %1041 = vmatprep.subr.bf16.mxu0 0
    %1042 = vmatpush1.bf16.msra.mxu0 0
    %1043 = vmatprep.subr.bf16.mxu0 0
    %1044 = vmatpush1.bf16.msra.mxu0 0
    %1045 = vmatprep.subr.bf16.mxu0 0
    %1046 = vmatpush1.bf16.msra.mxu0 0
    %1047 = vmatprep.subr.bf16.mxu0 0
    %1048 = vmatpush1.bf16.msra.mxu0 0
    %1049 = vmatprep.subr.bf16.mxu0 0
    %1050 = vmatpush1.bf16.msra.mxu0 0
    %1051 = vmatprep.mubr.bf16.mxu0 0
    %1052 = vmatmul.mubr.bf16.gmra.mrb[0].mxu0 %v954
    %v1053 = vpop.f32.mrb[0].mxu0
    %v1054 = vadd.f32 0.0, %v1053
    %v1055 = vpop.f32.mrb[0].mxu0
    %v1056 = vpop.f32.mrb[0].mxu0
    %v1057 = vpop.f32.mrb[0].mxu0
    %1058 = vdwg.mxu0
    %v1059 = vadd.f32 %v802, %v1054
    %v1060 = vadd.s32 %v33, 512
    %v1061 = vadd.s32 %v34, %v1060
    %v1062 = vmul.u32 %v1061, 2654435769
    %v1063 = vadd.s32 %v1062, 2325067718
    %v1064 = vxor.u32 %v1063, 1759714724
    %v1065 = vshra.s32 %v1064, 16
    %v1066 = vand.u32 %v1065, 65535
    %v1067 = vxor.u32 %v1064, %v1066
    %v1068 = vmul.u32 %v1067, 2146121005
    %v1069 = vshra.s32 %v1068, 15
    %v1070 = vand.u32 %v1069, 131071
    %v1071 = vxor.u32 %v1068, %v1070
    %v1072 = vmul.u32 %v1071, 2221713035
    %v1073 = vshra.s32 %v1072, 16
    %v1074 = vand.u32 %v1073, 65535
    %v1075 = vxor.u32 %v1072, %v1074
    %v1076 = vand.u32 %v1075, 8388607
    %v1077 = vcvt.s32.f32 %v1076
    %v1078 = vmul.f32 %v1077, 1.1920929e-07
    %v1079 = vadd.f32 %v1078, 5.9604645e-08
    %v1080 = vxor.u32 %v1063, 3039394381
    %v1081 = vshra.s32 %v1080, 16
    %v1082 = vand.u32 %v1081, 65535
    %v1083 = vxor.u32 %v1080, %v1082
    %v1084 = vmul.u32 %v1083, 2146121005
    %v1085 = vshra.s32 %v1084, 15
    %v1086 = vand.u32 %v1085, 131071
    %v1087 = vxor.u32 %v1084, %v1086
    %v1088 = vmul.u32 %v1087, 2221713035
    %v1089 = vshra.s32 %v1088, 16
    %v1090 = vand.u32 %v1089, 65535
    %v1091 = vxor.u32 %v1088, %v1090
    %v1092 = vand.u32 %v1091, 8388607
    %v1093 = vcvt.s32.f32 %v1092
    %v1094 = vmul.f32 %v1093, 1.1920929e-07
    %v1095 = vadd.f32 %v1094, 5.9604645e-08
    %v1096 = vlog2.pop %v1079
    %v1097 = vmul.f32 %v1096, 0.6931472
    %v1098 = vmul.f32 %v1097, -2.0
    %v1099 = vrsqrt.pop %v1098
    %v1100 = vmul.f32 %v1098, %v1099
    %vm1101 = vcmp.eq.f32.partialorder %v1098, inf
    %v1102 = vsel %vm1101, %v1098, %v1100
    %vm1103 = vcmp.eq.f32.partialorder %v1098, 0.0
    %v1104 = vand.u32 %v1098, 2147483648
    %v1105 = vsel %vm1103, %v1104, %v1102
    %v1106 = vmul.f32 %v1095, 6.2831855
    %v1107 = vand.u32 2147483647, %v1106
    %vm1108 = vcmp.le.f32.partialorder %v1107, 0.7853982
    %vm1109 = vcmp.lt.s32.totalorder %v1106, 0
    %v1110 = vand.u32 %v1106, 2139095040
    %v1111 = vshrl.u32 %v1110, 23
    %v1112 = vsub.s32 %v1111, 127
    %v1113 = vand.u32 2147483647, %v1106
    %v1114 = vand.u32 %v1113, 8388607
    %v1115 = vor.u32 %v1114, 8388608
    %v1116 = vsub.s32 0, %v1115
    %v1117 = vadd.s32 %v1112, 1
    %vm1118 = vcmp.gt.s32.totalorder %v1117, 0
    %v1119 = vsel %vm1118, %v1117, 0
    %v1120 = vshrl.u32 %v1119, 5
    %v1121 = vand.u32 %v1119, 31
    %v1122 = vsub.s32 32, %v1121
    %v1123 = vshrl.u32 683565275, %v1122
    %v1124 = vshll.u32 683565275, %v1121
    %v1125 = vshrl.u32 2475754826, %v1122
    %v1126 = vor.u32 %v1124, %v1125
    %v1127 = vshll.u32 2475754826, %v1121
    %v1128 = vshrl.u32 2131351028, %v1122
    %v1129 = vor.u32 %v1127, %v1128
    %v1130 = vshll.u32 2131351028, %v1121
    %v1131 = vshrl.u32 2102212464, %v1122
    %v1132 = vor.u32 %v1130, %v1131
    %v1133 = vshll.u32 2102212464, %v1121
    %v1134 = vshrl.u32 920167782, %v1122
    %v1135 = vor.u32 %v1133, %v1134
    %v1136 = vshll.u32 920167782, %v1121
    %v1137 = vshrl.u32 1326507024, %v1122
    %v1138 = vor.u32 %v1136, %v1137
    %vm1139 = vcmp.lt.s32.totalorder %v1120, 1
    %vm1140 = vcmp.lt.s32.totalorder %v1120, 2
    %vm1141 = vcmp.lt.s32.totalorder %v1120, 3
    %vm1142 = vcmp.lt.s32.totalorder %v1120, 4
    %v1143 = vsel %vm1139, %v1123, %v1126
    %v1144 = vsel %vm1142, %v1132, 2102212464
    %v1145 = vsel %vm1141, %v1129, %v1144
    %v1146 = vsel %vm1140, %v1143, %v1145
    %v1147 = vsel %vm1139, %v1126, %v1129
    %v1148 = vsel %vm1142, %v1135, 920167782
    %v1149 = vsel %vm1141, %v1132, %v1148
    %v1150 = vsel %vm1140, %v1147, %v1149
    %v1151 = vsel %vm1139, %v1129, %v1132
    %v1152 = vsel %vm1142, %v1138, 1326507024
    %v1153 = vsel %vm1141, %v1135, %v1152
    %v1154 = vsel %vm1140, %v1151, %v1153
    %v1155 = vshll.u32 %v1115, 8
    %v1156 = vmul.u32.u64.compose %v1155, %v1154
    %v1157 = vextract.low.u32 %v1156
    %v1158 = vextract.high.u32 %v1156
    %v1159 = vmul.u32.u64.compose %v1155, %v1150
    %v1160 = vextract.low.u32 %v1159
    %v1161 = vextract.high.u32 %v1159
    %v1162 = vmul.u32 %v1155, %v1146
    %v1163 = vadd.s32 %v1158, %v1160
    %vm1164 = vc.u32 %v1158, %v1160
    %v1165 = vadd.s32 %v1161, 1
    %v1166 = vsel %vm1164, %v1165, %v1161
    %v1167 = vadd.s32 %v1162, %v1166
    %v1168 = vadd.s32 %v1167, 536870912
    %v1169 = vshrl.u32 %v1168, 30
    %v1170 = vshll.u32 %v1169, 30
    %v1171 = vsub.s32 %v1167, %v1170
    %vm1172 = vcmp.lt.s32.totalorder %v1171, 0
    %v1173 = vsub.s32 0, %v1171
    %v1174 = vsel %vm1172, %v1173, %v1171
    %v1175 = vclz %v1174
    %v1176 = vsub.s32 %v1175, 2
    %vm1177 = vcmp.gt.s32.totalorder 0, %v1176
    %v1178 = vsel %vm1177, 0, %v1176
    %v1179 = vsub.s32 32, %v1178
    %v1180 = vshll.u32 %v1171, %v1178
    %v1181 = vshrl.u32 %v1163, %v1179
    %v1182 = vor.u32 %v1180, %v1181
    %v1183 = vsub.s32 4294967266, %v1178
    %v1184 = vadd.s32 %v1183, 127
    %v1185 = vshll.u32 %v1184, 23
    %v1186 = vor.u32 4788187, %v1185
    %v1187 = vand.u32 2147483647, %v1186
    %v1189 = vcvt.s32.f32 %v1182
    %v1190 = vmul.f32 %v1189, %v1187
    %v1191 = vxor.u32 %v1190, 2147483648
    %v1192 = vsel %vm1109, %v1191, %v1190
    %v1193 = vsub.s32 4, %v1169
    %v1194 = vsel %vm1109, %v1193, %v1169
    %v1195 = vsel %vm1108, %v1106, %v1192
    %v1196 = vsel %vm1108, 0, %v1194
    %v1197 = vcosq.f32.pop %v1195
    %v1198 = vsinq.f32.pop %v1195
    %vm1199 = vweird.f32 %v1106
    %v1200 = vand.u32 %v1196, 3
    %vm1201 = vcmp.lt.s32.totalorder %v1200, 2
    %vm1202 = vcmp.eq.s32.totalorder %v1200, 0
    %v1203 = vxor.u32 %v1198, 2147483648
    %v1204 = vsel %vm1202, %v1197, %v1203
    %vm1205 = vcmp.eq.s32.totalorder %v1200, 2
    %v1206 = vxor.u32 %v1197, 2147483648
    %v1207 = vsel %vm1205, %v1206, %v1198
    %v1208 = vsel %vm1201, %v1204, %v1207
    %v1209 = vsel %vm1199, nan, %v1208
    %v1210 = vmul.f32 %v1105, %v1209
    %v1211 = vpack.c.bf16 %v1210, %v1210
    %v1212 = vld [vmem:[#allocation2 + $0x100] sm:$0xf]
    %v1213 = vld [vmem:[#allocation2 + $0x104] sm:$0xf]
    %v1214 = vld [vmem:[#allocation2 + $0x108] sm:$0xf]
    %v1215 = vld [vmem:[#allocation2 + $0x10c] sm:$0xf]
    %v1216 = vld [vmem:[#allocation2 + $0x110] sm:$0xf]
    %v1217 = vld [vmem:[#allocation2 + $0x114] sm:$0xf]
    %v1218 = vld [vmem:[#allocation2 + $0x118] sm:$0xf]
    %v1219 = vld [vmem:[#allocation2 + $0x11c] sm:$0xf]
    %v1220 = vld [vmem:[#allocation2 + $0x120] sm:$0xf]
    %v1221 = vld [vmem:[#allocation2 + $0x124] sm:$0xf]
    %v1222 = vld [vmem:[#allocation2 + $0x128] sm:$0xf]
    %v1223 = vld [vmem:[#allocation2 + $0x12c] sm:$0xf]
    %v1224 = vld [vmem:[#allocation2 + $0x130] sm:$0xf]
    %v1225 = vld [vmem:[#allocation2 + $0x134] sm:$0xf]
    %v1226 = vld [vmem:[#allocation2 + $0x138] sm:$0xf]
    %v1227 = vld [vmem:[#allocation2 + $0x13c] sm:$0xf]
    %v1244 = vunpack.c.l.b16 %v1212
    %v1245 = vunpack.c.l.b16 %v1213
    %v1246 = vunpack.c.l.b16 %v1214
    %v1247 = vunpack.c.l.b16 %v1215
    %v1248 = vunpack.c.l.b16 %v1216
    %v1249 = vunpack.c.l.b16 %v1217
    %v1250 = vunpack.c.l.b16 %v1218
    %v1251 = vunpack.c.l.b16 %v1219
    %v1252 = vunpack.c.l.b16 %v1220
    %v1253 = vunpack.c.l.b16 %v1221
    %v1254 = vunpack.c.l.b16 %v1222
    %v1255 = vunpack.c.l.b16 %v1223
    %v1256 = vunpack.c.l.b16 %v1224
    %v1257 = vunpack.c.l.b16 %v1225
    %v1258 = vunpack.c.l.b16 %v1226
    %v1259 = vunpack.c.l.b16 %v1227
    %v1260 = vpack.c.b16 %v1245, %v1244
    %v1261 = vpack.c.b16 %v1247, %v1246
    %v1262 = vpack.c.b16 %v1249, %v1248
    %v1263 = vpack.c.b16 %v1251, %v1250
    %v1264 = vpack.c.b16 %v1253, %v1252
    %v1265 = vpack.c.b16 %v1255, %v1254
    %v1266 = vpack.c.b16 %v1257, %v1256
    %v1267 = vpack.c.b16 %v1259, %v1258
    %1276 = vmatprep.subr.bf16.mxu0 0
    %1277 = vmatpush1.bf16.msra.mxu0 %v1260
    %1278 = vmatprep.subr.bf16.mxu0 0
    %1279 = vmatpush1.bf16.msra.mxu0 %v1261
    %1280 = vmatprep.subr.bf16.mxu0 0
    %1281 = vmatpush1.bf16.msra.mxu0 %v1262
    %1282 = vmatprep.subr.bf16.mxu0 0
    %1283 = vmatpush1.bf16.msra.mxu0 %v1263
    %1284 = vmatprep.subr.bf16.mxu0 0
    %1285 = vmatpush1.bf16.msra.mxu0 %v1264
    %1286 = vmatprep.subr.bf16.mxu0 0
    %1287 = vmatpush1.bf16.msra.mxu0 %v1265
    %1288 = vmatprep.subr.bf16.mxu0 0
    %1289 = vmatpush1.bf16.msra.mxu0 %v1266
    %1290 = vmatprep.subr.bf16.mxu0 0
    %1291 = vmatpush1.bf16.msra.mxu0 %v1267
    %1292 = vmatprep.subr.bf16.mxu0 0
    %1293 = vmatpush1.bf16.msra.mxu0 0
    %1294 = vmatprep.subr.bf16.mxu0 0
    %1295 = vmatpush1.bf16.msra.mxu0 0
    %1296 = vmatprep.subr.bf16.mxu0 0
    %1297 = vmatpush1.bf16.msra.mxu0 0
    %1298 = vmatprep.subr.bf16.mxu0 0
    %1299 = vmatpush1.bf16.msra.mxu0 0
    %1300 = vmatprep.subr.bf16.mxu0 0
    %1301 = vmatpush1.bf16.msra.mxu0 0
    %1302 = vmatprep.subr.bf16.mxu0 0
    %1303 = vmatpush1.bf16.msra.mxu0 0
    %1304 = vmatprep.subr.bf16.mxu0 0
    %1305 = vmatpush1.bf16.msra.mxu0 0
    %1306 = vmatprep.subr.bf16.mxu0 0
    %1307 = vmatpush1.bf16.msra.mxu0 0
    %1308 = vmatprep.mubr.bf16.mxu0 0
    %1309 = vmatmul.mubr.bf16.gmra.mrb[0].mxu0 %v1211
    %v1310 = vpop.f32.mrb[0].mxu0
    %v1311 = vadd.f32 0.0, %v1310
    %v1312 = vpop.f32.mrb[0].mxu0
    %v1313 = vpop.f32.mrb[0].mxu0
    %v1314 = vpop.f32.mrb[0].mxu0
    %1315 = vdwg.mxu0
    %v1316 = vadd.f32 %v1059, %v1311
    %v1317 = vadd.s32 %v33, 640
    %v1318 = vadd.s32 %v34, %v1317
    %v1319 = vmul.u32 %v1318, 2654435769
    %v1320 = vadd.s32 %v1319, 2325067718
    %v1321 = vxor.u32 %v1320, 1759714724
    %v1322 = vshra.s32 %v1321, 16
    %v1323 = vand.u32 %v1322, 65535
    %v1324 = vxor.u32 %v1321, %v1323
    %v1325 = vmul.u32 %v1324, 2146121005
    %v1326 = vshra.s32 %v1325, 15
    %v1327 = vand.u32 %v1326, 131071
    %v1328 = vxor.u32 %v1325, %v1327
    %v1329 = vmul.u32 %v1328, 2221713035
    %v1330 = vshra.s32 %v1329, 16
    %v1331 = vand.u32 %v1330, 65535
    %v1332 = vxor.u32 %v1329, %v1331
    %v1333 = vand.u32 %v1332, 8388607
    %v1334 = vcvt.s32.f32 %v1333
    %v1335 = vmul.f32 %v1334, 1.1920929e-07
    %v1336 = vadd.f32 %v1335, 5.9604645e-08
    %v1337 = vxor.u32 %v1320, 3039394381
    %v1338 = vshra.s32 %v1337, 16
    %v1339 = vand.u32 %v1338, 65535
    %v1340 = vxor.u32 %v1337, %v1339
    %v1341 = vmul.u32 %v1340, 2146121005
    %v1342 = vshra.s32 %v1341, 15
    %v1343 = vand.u32 %v1342, 131071
    %v1344 = vxor.u32 %v1341, %v1343
    %v1345 = vmul.u32 %v1344, 2221713035
    %v1346 = vshra.s32 %v1345, 16
    %v1347 = vand.u32 %v1346, 65535
    %v1348 = vxor.u32 %v1345, %v1347
    %v1349 = vand.u32 %v1348, 8388607
    %v1350 = vcvt.s32.f32 %v1349
    %v1351 = vmul.f32 %v1350, 1.1920929e-07
    %v1352 = vadd.f32 %v1351, 5.9604645e-08
    %v1353 = vlog2.pop %v1336
    %v1354 = vmul.f32 %v1353, 0.6931472
    %v1355 = vmul.f32 %v1354, -2.0
    %v1356 = vrsqrt.pop %v1355
    %v1357 = vmul.f32 %v1355, %v1356
    %vm1358 = vcmp.eq.f32.partialorder %v1355, inf
    %v1359 = vsel %vm1358, %v1355, %v1357
    %vm1360 = vcmp.eq.f32.partialorder %v1355, 0.0
    %v1361 = vand.u32 %v1355, 2147483648
    %v1362 = vsel %vm1360, %v1361, %v1359
    %v1363 = vmul.f32 %v1352, 6.2831855
    %v1364 = vand.u32 2147483647, %v1363
    %vm1365 = vcmp.le.f32.partialorder %v1364, 0.7853982
    %vm1366 = vcmp.lt.s32.totalorder %v1363, 0
    %v1367 = vand.u32 %v1363, 2139095040
    %v1368 = vshrl.u32 %v1367, 23
    %v1369 = vsub.s32 %v1368, 127
    %v1370 = vand.u32 2147483647, %v1363
    %v1371 = vand.u32 %v1370, 8388607
    %v1372 = vor.u32 %v1371, 8388608
    %v1373 = vsub.s32 0, %v1372
    %v1374 = vadd.s32 %v1369, 1
    %vm1375 = vcmp.gt.s32.totalorder %v1374, 0
    %v1376 = vsel %vm1375, %v1374, 0
    %v1377 = vshrl.u32 %v1376, 5
    %v1378 = vand.u32 %v1376, 31
    %v1379 = vsub.s32 32, %v1378
    %v1380 = vshrl.u32 683565275, %v1379
    %v1381 = vshll.u32 683565275, %v1378
    %v1382 = vshrl.u32 2475754826, %v1379
    %v1383 = vor.u32 %v1381, %v1382
    %v1384 = vshll.u32 2475754826, %v1378
    %v1385 = vshrl.u32 2131351028, %v1379
    %v1386 = vor.u32 %v1384, %v1385
    %v1387 = vshll.u32 2131351028, %v1378
    %v1388 = vshrl.u32 2102212464, %v1379
    %v1389 = vor.u32 %v1387, %v1388
    %v1390 = vshll.u32 2102212464, %v1378
    %v1391 = vshrl.u32 920167782, %v1379
    %v1392 = vor.u32 %v1390, %v1391
    %v1393 = vshll.u32 920167782, %v1378
    %v1394 = vshrl.u32 1326507024, %v1379
    %v1395 = vor.u32 %v1393, %v1394
    %vm1396 = vcmp.lt.s32.totalorder %v1377, 1
    %vm1397 = vcmp.lt.s32.totalorder %v1377, 2
    %vm1398 = vcmp.lt.s32.totalorder %v1377, 3
    %vm1399 = vcmp.lt.s32.totalorder %v1377, 4
    %v1400 = vsel %vm1396, %v1380, %v1383
    %v1401 = vsel %vm1399, %v1389, 2102212464
    %v1402 = vsel %vm1398, %v1386, %v1401
    %v1403 = vsel %vm1397, %v1400, %v1402
    %v1404 = vsel %vm1396, %v1383, %v1386
    %v1405 = vsel %vm1399, %v1392, 920167782
    %v1406 = vsel %vm1398, %v1389, %v1405
    %v1407 = vsel %vm1397, %v1404, %v1406
    %v1408 = vsel %vm1396, %v1386, %v1389
    %v1409 = vsel %vm1399, %v1395, 1326507024
    %v1410 = vsel %vm1398, %v1392, %v1409
    %v1411 = vsel %vm1397, %v1408, %v1410
    %v1412 = vshll.u32 %v1372, 8
    %v1413 = vmul.u32.u64.compose %v1412, %v1411
    %v1414 = vextract.low.u32 %v1413
    %v1415 = vextract.high.u32 %v1413
    %v1416 = vmul.u32.u64.compose %v1412, %v1407
    %v1417 = vextract.low.u32 %v1416
    %v1418 = vextract.high.u32 %v1416
    %v1419 = vmul.u32 %v1412, %v1403
    %v1420 = vadd.s32 %v1415, %v1417
    %vm1421 = vc.u32 %v1415, %v1417
    %v1422 = vadd.s32 %v1418, 1
    %v1423 = vsel %vm1421, %v1422, %v1418
    %v1424 = vadd.s32 %v1419, %v1423
    %v1425 = vadd.s32 %v1424, 536870912
    %v1426 = vshrl.u32 %v1425, 30
    %v1427 = vshll.u32 %v1426, 30
    %v1428 = vsub.s32 %v1424, %v1427
    %vm1429 = vcmp.lt.s32.totalorder %v1428, 0
    %v1430 = vsub.s32 0, %v1428
    %v1431 = vsel %vm1429, %v1430, %v1428
    %v1432 = vclz %v1431
    %v1433 = vsub.s32 %v1432, 2
    %vm1434 = vcmp.gt.s32.totalorder 0, %v1433
    %v1435 = vsel %vm1434, 0, %v1433
    %v1436 = vsub.s32 32, %v1435
    %v1437 = vshll.u32 %v1428, %v1435
    %v1438 = vshrl.u32 %v1420, %v1436
    %v1439 = vor.u32 %v1437, %v1438
    %v1440 = vsub.s32 4294967266, %v1435
    %v1441 = vadd.s32 %v1440, 127
    %v1442 = vshll.u32 %v1441, 23
    %v1443 = vor.u32 4788187, %v1442
    %v1444 = vand.u32 2147483647, %v1443
    %v1446 = vcvt.s32.f32 %v1439
    %v1447 = vmul.f32 %v1446, %v1444
    %v1448 = vxor.u32 %v1447, 2147483648
    %v1449 = vsel %vm1366, %v1448, %v1447
    %v1450 = vsub.s32 4, %v1426
    %v1451 = vsel %vm1366, %v1450, %v1426
    %v1452 = vsel %vm1365, %v1363, %v1449
    %v1453 = vsel %vm1365, 0, %v1451
    %v1454 = vcosq.f32.pop %v1452
    %v1455 = vsinq.f32.pop %v1452
    %vm1456 = vweird.f32 %v1363
    %v1457 = vand.u32 %v1453, 3
    %vm1458 = vcmp.lt.s32.totalorder %v1457, 2
    %vm1459 = vcmp.eq.s32.totalorder %v1457, 0
    %v1460 = vxor.u32 %v1455, 2147483648
    %v1461 = vsel %vm1459, %v1454, %v1460
    %vm1462 = vcmp.eq.s32.totalorder %v1457, 2
    %v1463 = vxor.u32 %v1454, 2147483648
    %v1464 = vsel %vm1462, %v1463, %v1455
    %v1465 = vsel %vm1458, %v1461, %v1464
    %v1466 = vsel %vm1456, nan, %v1465
    %v1467 = vmul.f32 %v1362, %v1466
    %v1468 = vpack.c.bf16 %v1467, %v1467
    %v1469 = vld [vmem:[#allocation2 + $0x140] sm:$0xf]
    %v1470 = vld [vmem:[#allocation2 + $0x144] sm:$0xf]
    %v1471 = vld [vmem:[#allocation2 + $0x148] sm:$0xf]
    %v1472 = vld [vmem:[#allocation2 + $0x14c] sm:$0xf]
    %v1473 = vld [vmem:[#allocation2 + $0x150] sm:$0xf]
    %v1474 = vld [vmem:[#allocation2 + $0x154] sm:$0xf]
    %v1475 = vld [vmem:[#allocation2 + $0x158] sm:$0xf]
    %v1476 = vld [vmem:[#allocation2 + $0x15c] sm:$0xf]
    %v1477 = vld [vmem:[#allocation2 + $0x160] sm:$0xf]
    %v1478 = vld [vmem:[#allocation2 + $0x164] sm:$0xf]
    %v1479 = vld [vmem:[#allocation2 + $0x168] sm:$0xf]
    %v1480 = vld [vmem:[#allocation2 + $0x16c] sm:$0xf]
    %v1481 = vld [vmem:[#allocation2 + $0x170] sm:$0xf]
    %v1482 = vld [vmem:[#allocation2 + $0x174] sm:$0xf]
    %v1483 = vld [vmem:[#allocation2 + $0x178] sm:$0xf]
    %v1484 = vld [vmem:[#allocation2 + $0x17c] sm:$0xf]
    %v1501 = vunpack.c.l.b16 %v1469
    %v1502 = vunpack.c.l.b16 %v1470
    %v1503 = vunpack.c.l.b16 %v1471
    %v1504 = vunpack.c.l.b16 %v1472
    %v1505 = vunpack.c.l.b16 %v1473
    %v1506 = vunpack.c.l.b16 %v1474
    %v1507 = vunpack.c.l.b16 %v1475
    %v1508 = vunpack.c.l.b16 %v1476
    %v1509 = vunpack.c.l.b16 %v1477
    %v1510 = vunpack.c.l.b16 %v1478
    %v1511 = vunpack.c.l.b16 %v1479
    %v1512 = vunpack.c.l.b16 %v1480
    %v1513 = vunpack.c.l.b16 %v1481
    %v1514 = vunpack.c.l.b16 %v1482
    %v1515 = vunpack.c.l.b16 %v1483
    %v1516 = vunpack.c.l.b16 %v1484
    %v1517 = vpack.c.b16 %v1502, %v1501
    %v1518 = vpack.c.b16 %v1504, %v1503
    %v1519 = vpack.c.b16 %v1506, %v1505
    %v1520 = vpack.c.b16 %v1508, %v1507
    %v1521 = vpack.c.b16 %v1510, %v1509
    %v1522 = vpack.c.b16 %v1512, %v1511
    %v1523 = vpack.c.b16 %v1514, %v1513
    %v1524 = vpack.c.b16 %v1516, %v1515
    %1533 = vmatprep.subr.bf16.mxu0 0
    %1534 = vmatpush1.bf16.msra.mxu0 %v1517
    %1535 = vmatprep.subr.bf16.mxu0 0
    %1536 = vmatpush1.bf16.msra.mxu0 %v1518
    %1537 = vmatprep.subr.bf16.mxu0 0
    %1538 = vmatpush1.bf16.msra.mxu0 %v1519
    %1539 = vmatprep.subr.bf16.mxu0 0
    %1540 = vmatpush1.bf16.msra.mxu0 %v1520
    %1541 = vmatprep.subr.bf16.mxu0 0
    %1542 = vmatpush1.bf16.msra.mxu0 %v1521
    %1543 = vmatprep.subr.bf16.mxu0 0
    %1544 = vmatpush1.bf16.msra.mxu0 %v1522
    %1545 = vmatprep.subr.bf16.mxu0 0
    %1546 = vmatpush1.bf16.msra.mxu0 %v1523
    %1547 = vmatprep.subr.bf16.mxu0 0
    %1548 = vmatpush1.bf16.msra.mxu0 %v1524
    %1549 = vmatprep.subr.bf16.mxu0 0
    %1550 = vmatpush1.bf16.msra.mxu0 0
    %1551 = vmatprep.subr.bf16.mxu0 0
    %1552 = vmatpush1.bf16.msra.mxu0 0
    %1553 = vmatprep.subr.bf16.mxu0 0
    %1554 = vmatpush1.bf16.msra.mxu0 0
    %1555 = vmatprep.subr.bf16.mxu0 0
    %1556 = vmatpush1.bf16.msra.mxu0 0
    %1557 = vmatprep.subr.bf16.mxu0 0
    %1558 = vmatpush1.bf16.msra.mxu0 0
    %1559 = vmatprep.subr.bf16.mxu0 0
    %1560 = vmatpush1.bf16.msra.mxu0 0
    %1561 = vmatprep.subr.bf16.mxu0 0
    %1562 = vmatpush1.bf16.msra.mxu0 0
    %1563 = vmatprep.subr.bf16.mxu0 0
    %1564 = vmatpush1.bf16.msra.mxu0 0
    %1565 = vmatprep.mubr.bf16.mxu0 0
    %1566 = vmatmul.mubr.bf16.gmra.mrb[0].mxu0 %v1468
    %v1567 = vpop.f32.mrb[0].mxu0
    %v1568 = vadd.f32 0.0, %v1567
    %v1569 = vpop.f32.mrb[0].mxu0
    %v1570 = vpop.f32.mrb[0].mxu0
    %v1571 = vpop.f32.mrb[0].mxu0
    %1572 = vdwg.mxu0
    %v1573 = vadd.f32 %v1316, %v1568
    %v1574 = vld [vmem:[%s1] sm:$0x1]
    %v1576 = vlaneseq
    %v1577 = vshrl.u32 %v1576, 7
    %v1578 = vsub.s32 0, %v1577
    %v1579 = vrot.slane %v1574, %v1578
    %v1581 = vadd.f32 %v1573, %v1579
    %1582 = vst [vmem:[#allocation5] sm:$0xff] %v1581
    // Predicated region
    $region14: #{tpu_custom_call.1} parent=1 // pred_check
      _
    $region15: #{tpu_custom_call.1} parent=1 // pred_check_branch
      %1584 = sbr.rel (0) target = $region17
    $region16: #{tpu_custom_call.1} parent=1 // pred_region
      %s1586 = ssub.s32 128, 128
      %1587 = vsyncadd [#allocation4], %s1586
      %s1589 = sshll.u32 [#allocation5], 4
      %s1590 = int_to_ptr.vmem [resolvable:$true] %s1589
      %1592 = dma.vmem_to_hbm [thread:$0]  %s1590, 128, %s2, [#allocation4]
    $region17: #{tpu_custom_call.1} parent=1 // pred_fallthru
      _
    // Predicated region
    $region18: #{tpu_custom_call.1} parent=1 // pred_check
      _
    $region19: #{tpu_custom_call.1} parent=1 // pred_check_branch
      %1594 = sbr.rel (0) target = $region21
    $region20: #{tpu_custom_call.1} parent=1 // pred_region
      %1595 = dma.done [#allocation4], 128
    $region21: #{tpu_custom_call.1} parent=1 // pred_fallthru
      _
    %1596 = vsyncpa [#allocation3], 1
    %1597 = vsyncpa [#allocation4], 1

</llo_original>
